<compile_context>
chip_gen: v7x
topology: tpu7x:2x2x1
jax: 0.10.0
libtpu: 0.0.40
codegen_flags: <defaults>
</compile_context>

<pallas_src>
import jax
import jax.numpy as jnp
from jax.experimental import pallas as pl
from jax.experimental.pallas import tpu as pltpu


def _lstm_seq_kernel(xf_ref, gp_ref, whh_ref, hp_ref, out_ref, hc_ref, h_scr):
    # Shapes (static at trace time):
    #   xf_ref : (T*B, 2)    time-major flattened input (x0 = xf[:, 0:1] sliced in-kernel)
    #   gp_ref : (3, 4H)     rows 0..1 = W_ih^T, row 2 = b_ih + b_hh
    #   whh_ref: (H, 4H)     hp_ref: (H+2, 2) rows 0..H-1 = W_lin[:, :H]^T, row H = W_lin[:, H]^T,
    #                        row H+1 = b_lin
    #   out_ref: (T*B, 2)    hc_ref: (2, B, H)  [h_n; c_n]
    #   h_scr  : (T*B, H)    VMEM scratch holding every h_t (time-major)
    B = hc_ref.shape[1]
    H = hc_ref.shape[2]
    T = xf_ref.shape[0] // B

    whh = whh_ref[...]                                             # (H, 4H)
    wih = gp_ref[0:2, :]                                           # (2, 4H)
    b = gp_ref[2:3, :]                                             # (1, 4H)

    xf = xf_ref[...]                                               # (T*B, 2)

    # Input-to-gate contribution for all timesteps in one MXU call: (T*B, 2) @ (2, 4H).
    xg = jnp.dot(xf, wih, preferred_element_type=jnp.float32)      # (T*B, 4H)
    # Time-major (T, B, 4H): (B, 4H) = (8, 128) is one vreg, leading-axis reads are free views.
    xg = xg.reshape(T, B, 4 * H) + b

    # Hoisted per-quarter scale for the single-tanh gate trick:
    # sigmoid(x) = 0.5*(tanh(0.5*x)+1)  ->  scale i/f/o quarters by 0.5, cell quarter by 1.
    half = jnp.float32(0.5)
    lane = jax.lax.broadcasted_iota(jnp.int32, (B, 4 * H), dimension=1)
    is_cell = (lane >= 2 * H) & (lane < 3 * H)
    gate_scale = jnp.where(is_cell, jnp.float32(1.0), half)        # (B, 4H), built once

    # --- Peeled t = 0 (h = c = 0): gates = xg[0], no h@whh matmul, no f*c term. ---
    t0 = jnp.tanh(xg[0] * gate_scale)                              # one EUP push
    s0 = half * (t0 + 1.0)                                         # i/f/o sigmoids via VPU
    c = s0[:, 0 * H:1 * H] * t0[:, 2 * H:3 * H]                    # c_1 = i * g
    h = s0[:, 3 * H:4 * H] * jnp.tanh(c)                           # h_1 = o * tanh(c)
    h_scr[pl.ds(0, B), :] = h

    # --- Remaining steps: one MXU push + one tanh EUP push per step on the serial chain. ---
    for t in range(1, T):
        gates = xg[t] + jnp.dot(h, whh, preferred_element_type=jnp.float32)   # (B, 4H)
        tg = jnp.tanh(gates * gate_scale)
        sg = half * (tg + 1.0)
        # PyTorch LSTM gate ordering: input, forget, cell, output.
        c = sg[:, 1 * H:2 * H] * c + sg[:, 0 * H:1 * H] * tg[:, 2 * H:3 * H]
        h = sg[:, 3 * H:4 * H] * jnp.tanh(c)
        h_scr[pl.ds(t * B, B), :] = h                               # vst slot, off the chain

    hc_ref[0, :, :] = h                                             # h_n
    hc_ref[1, :, :] = c                                             # c_n

    # --- Hoisted output head: one matmul for all timesteps, one lane-masked exp, one store. ---
    wl_h = hp_ref[0:H, :]                                           # (H, 2)
    wl_x = hp_ref[H:H + 1, :]                                       # (1, 2)
    b_l = hp_ref[H + 1:H + 2, :]                                    # (1, 2)
    y = jnp.dot(h_scr[...], wl_h, preferred_element_type=jnp.float32)          # (T*B, 2)
    y = y + xf[:, 0:1] * wl_x + b_l
    out_lane = jax.lax.broadcasted_iota(jnp.int32, y.shape, dimension=1)
    out_ref[...] = jnp.where(out_lane == 1, jnp.exp(y), y)          # [mean, exp(log_var)]


@jax.jit
def sequence_model_forward(x, params):
    """Pallas implementation of SequenceModel.forward (hidden=None)."""
    B, T, _ = x.shape
    H = params["whh_t"].shape[0]

    # Pad batch to 8 sublanes so per-step vreg ops do full 8-row work; padded rows are
    # independent (row-wise recurrence) and sliced off below.
    B_pad = max(8, ((B + 7) // 8) * 8)
    x_p = jnp.pad(x, ((0, B_pad - B), (0, 0), (0, 0))) if B_pad != B else x

    # Wrapper-side layout plumbing: time-major flatten of x.
    x_tm = jnp.transpose(x_p, (1, 0, 2)).reshape(T * B_pad, 2)      # (T*B_pad, 2)

    vmem = pl.BlockSpec(memory_space=pltpu.MemorySpace.VMEM)
    out_shapes = (
        jax.ShapeDtypeStruct((T * B_pad, 2), jnp.float32),          # time-major [mean, var]
        jax.ShapeDtypeStruct((2, B_pad, H), jnp.float32),           # [h_n; c_n]
    )
    y_flat, hc = pl.pallas_call(
        _lstm_seq_kernel,
        out_shape=out_shapes,
        in_specs=[vmem] * 4,
        out_specs=(vmem, vmem),
        scratch_shapes=[pltpu.VMEM((T * B_pad, H), jnp.float32)],
    )(x_tm, params["gate_slab"], params["whh_t"], params["head_slab"])

    outputs = jnp.transpose(y_flat.reshape(T, B_pad, 2), (1, 0, 2))[:B]
    return outputs, (hc[0:1, :B], hc[1:2, :B])


def init_params(key, hidden_size=32, input_size=2):
    """Deterministic synthetic parameters, PyTorch-style U(-1/sqrt(fan), 1/sqrt(fan)),
    pre-packed into the slab layout the kernel consumes."""
    H = hidden_size
    k_rnn = 1.0 / jnp.sqrt(jnp.float32(H))
    k_lin = 1.0 / jnp.sqrt(jnp.float32(H + 1))
    ks = jax.random.split(key, 6)
    w_ih = jax.random.uniform(ks[0], (4 * H, input_size), jnp.float32, -k_rnn, k_rnn)
    w_hh = jax.random.uniform(ks[1], (4 * H, H), jnp.float32, -k_rnn, k_rnn)
    b_ih = jax.random.uniform(ks[2], (4 * H,), jnp.float32, -k_rnn, k_rnn)
    b_hh = jax.random.uniform(ks[3], (4 * H,), jnp.float32, -k_rnn, k_rnn)
    w_lin = jax.random.uniform(ks[4], (2, H + 1), jnp.float32, -k_lin, k_lin)
    b_lin = jax.random.uniform(ks[5], (2,), jnp.float32, -k_lin, k_lin)
    gate_slab = jnp.concatenate(
        [jnp.asarray(w_ih.T), (b_ih + b_hh)[None, :]], axis=0)       # (3, 4H)
    head_slab = jnp.concatenate(
        [jnp.asarray(w_lin[:, :H].T), jnp.asarray(w_lin[:, H:].T), b_lin[None, :]],
        axis=0)                                                      # (H+2, 2)
    return {
        "gate_slab": gate_slab,                    # rows 0..1: W_ih^T, row 2: b_ih+b_hh
        "whh_t": jnp.asarray(w_hh.T),              # (H, 4H)
        "head_slab": head_slab,                    # rows 0..H-1: W_h^T, row H: W_x^T, H+1: b
    }


def reference_forward(x, params):
    """Pure-JAX reference mirroring torch.nn.LSTM + Linear semantics."""
    B, T, _ = x.shape
    H = params["whh_t"].shape[0]
    wih_t = params["gate_slab"][0:2, :]
    b = params["gate_slab"][2:3, :]
    wl_h = params["head_slab"][0:H, :]
    wl_x = params["head_slab"][H:H + 1, :]
    b_l = params["head_slab"][H + 1:H + 2, :]
    h = jnp.zeros((B, H), jnp.float32)
    c = jnp.zeros((B, H), jnp.float32)
    xg = (x.reshape(B * T, 2) @ wih_t).reshape(B, T, 4 * H) + b
    outs = []
    for t in range(T):
        gates = xg[:, t, :] + h @ params["whh_t"]
        i = jax.nn.sigmoid(gates[:, :H])
        f = jax.nn.sigmoid(gates[:, H:2 * H])
        g = jnp.tanh(gates[:, 2 * H:3 * H])
        o = jax.nn.sigmoid(gates[:, 3 * H:])
        c = f * c + i * g
        h = o * jnp.tanh(c)
        y = h @ wl_h + x[:, t, 0:1] * wl_x + b_l
        outs.append(jnp.concatenate([y[:, 0:1], jnp.exp(y[:, 1:2])], axis=-1))
    return jnp.stack(outs, axis=1), (h[None], c[None])


if __name__ == "__main__":
    B, T, H = 2, 8, 32  # batch=2, seq=8, hidden=32, input features=2
    key = jax.random.PRNGKey(0)
    k_param, k_x = jax.random.split(key)
    params = init_params(k_param, hidden_size=H)
    x = jax.random.normal(k_x, (B, T, 2), jnp.float32)

    outputs, (h_n, c_n) = sequence_model_forward(x, params)
    jax.block_until_ready((outputs, h_n, c_n))

    ref_out, (ref_h, ref_c) = reference_forward(x, params)
    assert outputs.shape == (B, T, 2)
    assert h_n.shape == (1, B, H) and c_n.shape == (1, B, H)
    assert jnp.allclose(outputs, ref_out, atol=1e-4, rtol=1e-4)
    assert jnp.allclose(h_n, ref_h, atol=1e-4, rtol=1e-4)
    assert jnp.allclose(c_n, ref_c, atol=1e-4, rtol=1e-4)

    print("KERNEL_OK")
</pallas_src>

<mosaic_0001>
module attributes {stable_mosaic.version = 11 : i64} {
  func.func @_lstm_seq_kernel(%arg0: memref<64x2xf32, #tpu.memory_space<vmem>>, %arg1: memref<3x128xf32, #tpu.memory_space<vmem>>, %arg2: memref<32x128xf32, #tpu.memory_space<vmem>>, %arg3: memref<34x2xf32, #tpu.memory_space<vmem>>, %arg4: memref<64x2xf32, #tpu.memory_space<vmem>>, %arg5: memref<2x8x32xf32, #tpu.memory_space<vmem>>, %arg6: memref<64x32xf32, #tpu.memory_space<vmem>>) attributes {dimension_semantics = [], scalar_prefetch = 0 : i64, scratch_operands = 1 : i64, tpu.core_type = #tpu.core_type<tc>} {
    %c0 = arith.constant 0 : index
    %c0_0 = arith.constant 0 : index
    %0 = vector.load %arg2[%c0, %c0_0] : memref<32x128xf32, #tpu.memory_space<vmem>>, vector<32x128xf32>
    %c0_1 = arith.constant 0 : index
    %c0_2 = arith.constant 0 : index
    %1 = vector.load %arg1[%c0_1, %c0_2] : memref<3x128xf32, #tpu.memory_space<vmem>>, vector<2x128xf32>
    %c2 = arith.constant 2 : index
    %c0_3 = arith.constant 0 : index
    %2 = vector.load %arg1[%c2, %c0_3] : memref<3x128xf32, #tpu.memory_space<vmem>>, vector<1x128xf32>
    %c0_4 = arith.constant 0 : index
    %c0_5 = arith.constant 0 : index
    %3 = vector.load %arg0[%c0_4, %c0_5] : memref<64x2xf32, #tpu.memory_space<vmem>>, vector<64x2xf32>
    %cst = arith.constant dense<0.000000e+00> : vector<64x128xf32>
    %4 = tpu.matmul %3, %1, %cst {dimension_numbers = #tpu.dot_dimension_numbers<[1], [0], [0], [1], [0, 0, 1, 1], [], []>} : vector<64x2xf32>, vector<2x128xf32>, vector<64x128xf32> -> vector<64x128xf32>
    %5 = vector.shape_cast %4 : vector<64x128xf32> to vector<8x8x128xf32>
    %6 = vector.shape_cast %2 : vector<1x128xf32> to vector<1x1x128xf32>
    %7 = vector.broadcast %6 : vector<1x1x128xf32> to vector<8x8x128xf32>
    %8 = arith.addf %5, %7 : vector<8x8x128xf32>
    %9 = tpu.iota {dimensions = array<i32: 1>} : vector<8x128xi32>
    %c64_i32 = arith.constant 64 : i32
    %10 = vector.broadcast %c64_i32 : i32 to vector<8x128xi32>
    %11 = arith.cmpi sge, %9, %10 : vector<8x128xi32>
    %c96_i32 = arith.constant 96 : i32
    %12 = vector.broadcast %c96_i32 : i32 to vector<8x128xi32>
    %13 = arith.cmpi slt, %9, %12 : vector<8x128xi32>
    %14 = arith.andi %11, %13 : vector<8x128xi1>
    %cst_6 = arith.constant 1.000000e+00 : f32
    %cst_7 = arith.constant 5.000000e-01 : f32
    %15 = vector.broadcast %cst_6 : f32 to vector<8x128xf32>
    %16 = vector.broadcast %cst_7 : f32 to vector<8x128xf32>
    %17 = arith.select %14, %15, %16 : vector<8x128xi1>, vector<8x128xf32>
    %18 = vector.extract_strided_slice %8 {offsets = [0, 0, 0], sizes = [1, 8, 128], strides = [1, 1, 1]} : vector<8x8x128xf32> to vector<1x8x128xf32>
    %19 = vector.shape_cast %18 : vector<1x8x128xf32> to vector<8x128xf32>
    %20 = arith.mulf %19, %17 : vector<8x128xf32>
    %21 = math.tanh %20 : vector<8x128xf32>
    %cst_8 = arith.constant 1.000000e+00 : f32
    %22 = vector.broadcast %cst_8 : f32 to vector<8x128xf32>
    %23 = arith.addf %21, %22 : vector<8x128xf32>
    %cst_9 = arith.constant 5.000000e-01 : f32
    %24 = vector.broadcast %cst_9 : f32 to vector<8x128xf32>
    %25 = arith.mulf %24, %23 : vector<8x128xf32>
    %26 = vector.extract_strided_slice %25 {offsets = [0, 0], sizes = [8, 32], strides = [1, 1]} : vector<8x128xf32> to vector<8x32xf32>
    %27 = vector.extract_strided_slice %21 {offsets = [0, 64], sizes = [8, 32], strides = [1, 1]} : vector<8x128xf32> to vector<8x32xf32>
    %28 = arith.mulf %26, %27 : vector<8x32xf32>
    %29 = vector.extract_strided_slice %25 {offsets = [0, 96], sizes = [8, 32], strides = [1, 1]} : vector<8x128xf32> to vector<8x32xf32>
    %30 = math.tanh %28 : vector<8x32xf32>
    %31 = arith.mulf %29, %30 : vector<8x32xf32>
    %c0_10 = arith.constant 0 : index
    %c0_11 = arith.constant 0 : index
    %32 = vector.load %arg6[%c0_10, %c0_11] : memref<64x32xf32, #tpu.memory_space<vmem>>, vector<8x32xf32>
    tpu.vector_store %arg6[%c0_10, %c0_11], %31 {strides = array<i32>} : memref<64x32xf32, #tpu.memory_space<vmem>>, vector<8x32xf32>,
    %33 = vector.extract_strided_slice %8 {offsets = [1, 0, 0], sizes = [1, 8, 128], strides = [1, 1, 1]} : vector<8x8x128xf32> to vector<1x8x128xf32>
    %34 = vector.shape_cast %33 : vector<1x8x128xf32> to vector<8x128xf32>
    %cst_12 = arith.constant dense<0.000000e+00> : vector<8x128xf32>
    %35 = tpu.matmul %31, %0, %cst_12 {dimension_numbers = #tpu.dot_dimension_numbers<[1], [0], [0], [1], [0, 0, 1, 1], [], []>} : vector<8x32xf32>, vector<32x128xf32>, vector<8x128xf32> -> vector<8x128xf32>
    %36 = arith.addf %34, %35 : vector<8x128xf32>
    %37 = arith.mulf %36, %17 : vector<8x128xf32>
    %38 = math.tanh %37 : vector<8x128xf32>
    %cst_13 = arith.constant 1.000000e+00 : f32
    %39 = vector.broadcast %cst_13 : f32 to vector<8x128xf32>
    %40 = arith.addf %38, %39 : vector<8x128xf32>
    %cst_14 = arith.constant 5.000000e-01 : f32
    %41 = vector.broadcast %cst_14 : f32 to vector<8x128xf32>
    %42 = arith.mulf %41, %40 : vector<8x128xf32>
    %43 = vector.extract_strided_slice %42 {offsets = [0, 32], sizes = [8, 32], strides = [1, 1]} : vector<8x128xf32> to vector<8x32xf32>
    %44 = arith.mulf %43, %28 : vector<8x32xf32>
    %45 = vector.extract_strided_slice %42 {offsets = [0, 0], sizes = [8, 32], strides = [1, 1]} : vector<8x128xf32> to vector<8x32xf32>
    %46 = vector.extract_strided_slice %38 {offsets = [0, 64], sizes = [8, 32], strides = [1, 1]} : vector<8x128xf32> to vector<8x32xf32>
    %47 = arith.mulf %45, %46 : vector<8x32xf32>
    %48 = arith.addf %44, %47 : vector<8x32xf32>
    %49 = vector.extract_strided_slice %42 {offsets = [0, 96], sizes = [8, 32], strides = [1, 1]} : vector<8x128xf32> to vector<8x32xf32>
    %50 = math.tanh %48 : vector<8x32xf32>
    %51 = arith.mulf %49, %50 : vector<8x32xf32>
    %c8 = arith.constant 8 : index
    %c0_15 = arith.constant 0 : index
    %52 = vector.load %arg6[%c8, %c0_15] : memref<64x32xf32, #tpu.memory_space<vmem>>, vector<8x32xf32>
    tpu.vector_store %arg6[%c8, %c0_15], %51 {strides = array<i32>} : memref<64x32xf32, #tpu.memory_space<vmem>>, vector<8x32xf32>,
    %53 = vector.extract_strided_slice %8 {offsets = [2, 0, 0], sizes = [1, 8, 128], strides = [1, 1, 1]} : vector<8x8x128xf32> to vector<1x8x128xf32>
    %54 = vector.shape_cast %53 : vector<1x8x128xf32> to vector<8x128xf32>
    %cst_16 = arith.constant dense<0.000000e+00> : vector<8x128xf32>
    %55 = tpu.matmul %51, %0, %cst_16 {dimension_numbers = #tpu.dot_dimension_numbers<[1], [0], [0], [1], [0, 0, 1, 1], [], []>} : vector<8x32xf32>, vector<32x128xf32>, vector<8x128xf32> -> vector<8x128xf32>
    %56 = arith.addf %54, %55 : vector<8x128xf32>
    %57 = arith.mulf %56, %17 : vector<8x128xf32>
    %58 = math.tanh %57 : vector<8x128xf32>
    %cst_17 = arith.constant 1.000000e+00 : f32
    %59 = vector.broadcast %cst_17 : f32 to vector<8x128xf32>
    %60 = arith.addf %58, %59 : vector<8x128xf32>
    %cst_18 = arith.constant 5.000000e-01 : f32
    %61 = vector.broadcast %cst_18 : f32 to vector<8x128xf32>
    %62 = arith.mulf %61, %60 : vector<8x128xf32>
    %63 = vector.extract_strided_slice %62 {offsets = [0, 32], sizes = [8, 32], strides = [1, 1]} : vector<8x128xf32> to vector<8x32xf32>
    %64 = arith.mulf %63, %48 : vector<8x32xf32>
    %65 = vector.extract_strided_slice %62 {offsets = [0, 0], sizes = [8, 32], strides = [1, 1]} : vector<8x128xf32> to vector<8x32xf32>
    %66 = vector.extract_strided_slice %58 {offsets = [0, 64], sizes = [8, 32], strides = [1, 1]} : vector<8x128xf32> to vector<8x32xf32>
    %67 = arith.mulf %65, %66 : vector<8x32xf32>
    %68 = arith.addf %64, %67 : vector<8x32xf32>
    %69 = vector.extract_strided_slice %62 {offsets = [0, 96], sizes = [8, 32], strides = [1, 1]} : vector<8x128xf32> to vector<8x32xf32>
    %70 = math.tanh %68 : vector<8x32xf32>
    %71 = arith.mulf %69, %70 : vector<8x32xf32>
    %c16 = arith.constant 16 : index
    %c0_19 = arith.constant 0 : index
    %72 = vector.load %arg6[%c16, %c0_19] : memref<64x32xf32, #tpu.memory_space<vmem>>, vector<8x32xf32>
    tpu.vector_store %arg6[%c16, %c0_19], %71 {strides = array<i32>} : memref<64x32xf32, #tpu.memory_space<vmem>>, vector<8x32xf32>,
    %73 = vector.extract_strided_slice %8 {offsets = [3, 0, 0], sizes = [1, 8, 128], strides = [1, 1, 1]} : vector<8x8x128xf32> to vector<1x8x128xf32>
    %74 = vector.shape_cast %73 : vector<1x8x128xf32> to vector<8x128xf32>
    %cst_20 = arith.constant dense<0.000000e+00> : vector<8x128xf32>
    %75 = tpu.matmul %71, %0, %cst_20 {dimension_numbers = #tpu.dot_dimension_numbers<[1], [0], [0], [1], [0, 0, 1, 1], [], []>} : vector<8x32xf32>, vector<32x128xf32>, vector<8x128xf32> -> vector<8x128xf32>
    %76 = arith.addf %74, %75 : vector<8x128xf32>
    %77 = arith.mulf %76, %17 : vector<8x128xf32>
    %78 = math.tanh %77 : vector<8x128xf32>
    %cst_21 = arith.constant 1.000000e+00 : f32
    %79 = vector.broadcast %cst_21 : f32 to vector<8x128xf32>
    %80 = arith.addf %78, %79 : vector<8x128xf32>
    %cst_22 = arith.constant 5.000000e-01 : f32
    %81 = vector.broadcast %cst_22 : f32 to vector<8x128xf32>
    %82 = arith.mulf %81, %80 : vector<8x128xf32>
    %83 = vector.extract_strided_slice %82 {offsets = [0, 32], sizes = [8, 32], strides = [1, 1]} : vector<8x128xf32> to vector<8x32xf32>
    %84 = arith.mulf %83, %68 : vector<8x32xf32>
    %85 = vector.extract_strided_slice %82 {offsets = [0, 0], sizes = [8, 32], strides = [1, 1]} : vector<8x128xf32> to vector<8x32xf32>
    %86 = vector.extract_strided_slice %78 {offsets = [0, 64], sizes = [8, 32], strides = [1, 1]} : vector<8x128xf32> to vector<8x32xf32>
    %87 = arith.mulf %85, %86 : vector<8x32xf32>
    %88 = arith.addf %84, %87 : vector<8x32xf32>
    %89 = vector.extract_strided_slice %82 {offsets = [0, 96], sizes = [8, 32], strides = [1, 1]} : vector<8x128xf32> to vector<8x32xf32>
    %90 = math.tanh %88 : vector<8x32xf32>
    %91 = arith.mulf %89, %90 : vector<8x32xf32>
    %c24 = arith.constant 24 : index
    %c0_23 = arith.constant 0 : index
    %92 = vector.load %arg6[%c24, %c0_23] : memref<64x32xf32, #tpu.memory_space<vmem>>, vector<8x32xf32>
    tpu.vector_store %arg6[%c24, %c0_23], %91 {strides = array<i32>} : memref<64x32xf32, #tpu.memory_space<vmem>>, vector<8x32xf32>,
    %93 = vector.extract_strided_slice %8 {offsets = [4, 0, 0], sizes = [1, 8, 128], strides = [1, 1, 1]} : vector<8x8x128xf32> to vector<1x8x128xf32>
    %94 = vector.shape_cast %93 : vector<1x8x128xf32> to vector<8x128xf32>
    %cst_24 = arith.constant dense<0.000000e+00> : vector<8x128xf32>
    %95 = tpu.matmul %91, %0, %cst_24 {dimension_numbers = #tpu.dot_dimension_numbers<[1], [0], [0], [1], [0, 0, 1, 1], [], []>} : vector<8x32xf32>, vector<32x128xf32>, vector<8x128xf32> -> vector<8x128xf32>
    %96 = arith.addf %94, %95 : vector<8x128xf32>
    %97 = arith.mulf %96, %17 : vector<8x128xf32>
    %98 = math.tanh %97 : vector<8x128xf32>
    %cst_25 = arith.constant 1.000000e+00 : f32
    %99 = vector.broadcast %cst_25 : f32 to vector<8x128xf32>
    %100 = arith.addf %98, %99 : vector<8x128xf32>
    %cst_26 = arith.constant 5.000000e-01 : f32
    %101 = vector.broadcast %cst_26 : f32 to vector<8x128xf32>
    %102 = arith.mulf %101, %100 : vector<8x128xf32>
    %103 = vector.extract_strided_slice %102 {offsets = [0, 32], sizes = [8, 32], strides = [1, 1]} : vector<8x128xf32> to vector<8x32xf32>
    %104 = arith.mulf %103, %88 : vector<8x32xf32>
    %105 = vector.extract_strided_slice %102 {offsets = [0, 0], sizes = [8, 32], strides = [1, 1]} : vector<8x128xf32> to vector<8x32xf32>
    %106 = vector.extract_strided_slice %98 {offsets = [0, 64], sizes = [8, 32], strides = [1, 1]} : vector<8x128xf32> to vector<8x32xf32>
    %107 = arith.mulf %105, %106 : vector<8x32xf32>
    %108 = arith.addf %104, %107 : vector<8x32xf32>
    %109 = vector.extract_strided_slice %102 {offsets = [0, 96], sizes = [8, 32], strides = [1, 1]} : vector<8x128xf32> to vector<8x32xf32>
    %110 = math.tanh %108 : vector<8x32xf32>
    %111 = arith.mulf %109, %110 : vector<8x32xf32>
    %c32 = arith.constant 32 : index
    %c0_27 = arith.constant 0 : index
    %112 = vector.load %arg6[%c32, %c0_27] : memref<64x32xf32, #tpu.memory_space<vmem>>, vector<8x32xf32>
    tpu.vector_store %arg6[%c32, %c0_27], %111 {strides = array<i32>} : memref<64x32xf32, #tpu.memory_space<vmem>>, vector<8x32xf32>,
    %113 = vector.extract_strided_slice %8 {offsets = [5, 0, 0], sizes = [1, 8, 128], strides = [1, 1, 1]} : vector<8x8x128xf32> to vector<1x8x128xf32>
    %114 = vector.shape_cast %113 : vector<1x8x128xf32> to vector<8x128xf32>
    %cst_28 = arith.constant dense<0.000000e+00> : vector<8x128xf32>
    %115 = tpu.matmul %111, %0, %cst_28 {dimension_numbers = #tpu.dot_dimension_numbers<[1], [0], [0], [1], [0, 0, 1, 1], [], []>} : vector<8x32xf32>, vector<32x128xf32>, vector<8x128xf32> -> vector<8x128xf32>
    %116 = arith.addf %114, %115 : vector<8x128xf32>
    %117 = arith.mulf %116, %17 : vector<8x128xf32>
    %118 = math.tanh %117 : vector<8x128xf32>
    %cst_29 = arith.constant 1.000000e+00 : f32
    %119 = vector.broadcast %cst_29 : f32 to vector<8x128xf32>
    %120 = arith.addf %118, %119 : vector<8x128xf32>
    %cst_30 = arith.constant 5.000000e-01 : f32
    %121 = vector.broadcast %cst_30 : f32 to vector<8x128xf32>
    %122 = arith.mulf %121, %120 : vector<8x128xf32>
    %123 = vector.extract_strided_slice %122 {offsets = [0, 32], sizes = [8, 32], strides = [1, 1]} : vector<8x128xf32> to vector<8x32xf32>
    %124 = arith.mulf %123, %108 : vector<8x32xf32>
    %125 = vector.extract_strided_slice %122 {offsets = [0, 0], sizes = [8, 32], strides = [1, 1]} : vector<8x128xf32> to vector<8x32xf32>
    %126 = vector.extract_strided_slice %118 {offsets = [0, 64], sizes = [8, 32], strides = [1, 1]} : vector<8x128xf32> to vector<8x32xf32>
    %127 = arith.mulf %125, %126 : vector<8x32xf32>
    %128 = arith.addf %124, %127 : vector<8x32xf32>
    %129 = vector.extract_strided_slice %122 {offsets = [0, 96], sizes = [8, 32], strides = [1, 1]} : vector<8x128xf32> to vector<8x32xf32>
    %130 = math.tanh %128 : vector<8x32xf32>
    %131 = arith.mulf %129, %130 : vector<8x32xf32>
    %c40 = arith.constant 40 : index
    %c0_31 = arith.constant 0 : index
    %132 = vector.load %arg6[%c40, %c0_31] : memref<64x32xf32, #tpu.memory_space<vmem>>, vector<8x32xf32>
    tpu.vector_store %arg6[%c40, %c0_31], %131 {strides = array<i32>} : memref<64x32xf32, #tpu.memory_space<vmem>>, vector<8x32xf32>,
    %133 = vector.extract_strided_slice %8 {offsets = [6, 0, 0], sizes = [1, 8, 128], strides = [1, 1, 1]} : vector<8x8x128xf32> to vector<1x8x128xf32>
    %134 = vector.shape_cast %133 : vector<1x8x128xf32> to vector<8x128xf32>
    %cst_32 = arith.constant dense<0.000000e+00> : vector<8x128xf32>
    %135 = tpu.matmul %131, %0, %cst_32 {dimension_numbers = #tpu.dot_dimension_numbers<[1], [0], [0], [1], [0, 0, 1, 1], [], []>} : vector<8x32xf32>, vector<32x128xf32>, vector<8x128xf32> -> vector<8x128xf32>
    %136 = arith.addf %134, %135 : vector<8x128xf32>
    %137 = arith.mulf %136, %17 : vector<8x128xf32>
    %138 = math.tanh %137 : vector<8x128xf32>
    %cst_33 = arith.constant 1.000000e+00 : f32
    %139 = vector.broadcast %cst_33 : f32 to vector<8x128xf32>
    %140 = arith.addf %138, %139 : vector<8x128xf32>
    %cst_34 = arith.constant 5.000000e-01 : f32
    %141 = vector.broadcast %cst_34 : f32 to vector<8x128xf32>
    %142 = arith.mulf %141, %140 : vector<8x128xf32>
    %143 = vector.extract_strided_slice %142 {offsets = [0, 32], sizes = [8, 32], strides = [1, 1]} : vector<8x128xf32> to vector<8x32xf32>
    %144 = arith.mulf %143, %128 : vector<8x32xf32>
    %145 = vector.extract_strided_slice %142 {offsets = [0, 0], sizes = [8, 32], strides = [1, 1]} : vector<8x128xf32> to vector<8x32xf32>
    %146 = vector.extract_strided_slice %138 {offsets = [0, 64], sizes = [8, 32], strides = [1, 1]} : vector<8x128xf32> to vector<8x32xf32>
    %147 = arith.mulf %145, %146 : vector<8x32xf32>
    %148 = arith.addf %144, %147 : vector<8x32xf32>
    %149 = vector.extract_strided_slice %142 {offsets = [0, 96], sizes = [8, 32], strides = [1, 1]} : vector<8x128xf32> to vector<8x32xf32>
    %150 = math.tanh %148 : vector<8x32xf32>
    %151 = arith.mulf %149, %150 : vector<8x32xf32>
    %c48 = arith.constant 48 : index
    %c0_35 = arith.constant 0 : index
    %152 = vector.load %arg6[%c48, %c0_35] : memref<64x32xf32, #tpu.memory_space<vmem>>, vector<8x32xf32>
    tpu.vector_store %arg6[%c48, %c0_35], %151 {strides = array<i32>} : memref<64x32xf32, #tpu.memory_space<vmem>>, vector<8x32xf32>,
    %153 = vector.extract_strided_slice %8 {offsets = [7, 0, 0], sizes = [1, 8, 128], strides = [1, 1, 1]} : vector<8x8x128xf32> to vector<1x8x128xf32>
    %154 = vector.shape_cast %153 : vector<1x8x128xf32> to vector<8x128xf32>
    %cst_36 = arith.constant dense<0.000000e+00> : vector<8x128xf32>
    %155 = tpu.matmul %151, %0, %cst_36 {dimension_numbers = #tpu.dot_dimension_numbers<[1], [0], [0], [1], [0, 0, 1, 1], [], []>} : vector<8x32xf32>, vector<32x128xf32>, vector<8x128xf32> -> vector<8x128xf32>
    %156 = arith.addf %154, %155 : vector<8x128xf32>
    %157 = arith.mulf %156, %17 : vector<8x128xf32>
    %158 = math.tanh %157 : vector<8x128xf32>
    %cst_37 = arith.constant 1.000000e+00 : f32
    %159 = vector.broadcast %cst_37 : f32 to vector<8x128xf32>
    %160 = arith.addf %158, %159 : vector<8x128xf32>
    %cst_38 = arith.constant 5.000000e-01 : f32
    %161 = vector.broadcast %cst_38 : f32 to vector<8x128xf32>
    %162 = arith.mulf %161, %160 : vector<8x128xf32>
    %163 = vector.extract_strided_slice %162 {offsets = [0, 32], sizes = [8, 32], strides = [1, 1]} : vector<8x128xf32> to vector<8x32xf32>
    %164 = arith.mulf %163, %148 : vector<8x32xf32>
    %165 = vector.extract_strided_slice %162 {offsets = [0, 0], sizes = [8, 32], strides = [1, 1]} : vector<8x128xf32> to vector<8x32xf32>
    %166 = vector.extract_strided_slice %158 {offsets = [0, 64], sizes = [8, 32], strides = [1, 1]} : vector<8x128xf32> to vector<8x32xf32>
    %167 = arith.mulf %165, %166 : vector<8x32xf32>
    %168 = arith.addf %164, %167 : vector<8x32xf32>
    %169 = vector.extract_strided_slice %162 {offsets = [0, 96], sizes = [8, 32], strides = [1, 1]} : vector<8x128xf32> to vector<8x32xf32>
    %170 = math.tanh %168 : vector<8x32xf32>
    %171 = arith.mulf %169, %170 : vector<8x32xf32>
    %c56 = arith.constant 56 : index
    %c0_39 = arith.constant 0 : index
    %172 = vector.load %arg6[%c56, %c0_39] : memref<64x32xf32, #tpu.memory_space<vmem>>, vector<8x32xf32>
    tpu.vector_store %arg6[%c56, %c0_39], %171 {strides = array<i32>} : memref<64x32xf32, #tpu.memory_space<vmem>>, vector<8x32xf32>,
    %c0_40 = arith.constant 0 : index
    %c0_41 = arith.constant 0 : index
    %c0_42 = arith.constant 0 : index
    %173 = vector.load %arg5[%c0_40, %c0_41, %c0_42] : memref<2x8x32xf32, #tpu.memory_space<vmem>>, vector<1x8x32xf32>
    %174 = vector.shape_cast %173 : vector<1x8x32xf32> to vector<8x32xf32>
    %175 = vector.shape_cast %171 : vector<8x32xf32> to vector<1x8x32xf32>
    tpu.vector_store %arg5[%c0_40, %c0_41, %c0_42], %175 {strides = array<i32>} : memref<2x8x32xf32, #tpu.memory_space<vmem>>, vector<1x8x32xf32>,
    %c1 = arith.constant 1 : index
    %c0_43 = arith.constant 0 : index
    %c0_44 = arith.constant 0 : index
    %176 = vector.load %arg5[%c1, %c0_43, %c0_44] : memref<2x8x32xf32, #tpu.memory_space<vmem>>, vector<1x8x32xf32>
    %177 = vector.shape_cast %176 : vector<1x8x32xf32> to vector<8x32xf32>
    %178 = vector.shape_cast %168 : vector<8x32xf32> to vector<1x8x32xf32>
    tpu.vector_store %arg5[%c1, %c0_43, %c0_44], %178 {strides = array<i32>} : memref<2x8x32xf32, #tpu.memory_space<vmem>>, vector<1x8x32xf32>,
    %c0_45 = arith.constant 0 : index
    %c0_46 = arith.constant 0 : index
    %179 = vector.load %arg3[%c0_45, %c0_46] : memref<34x2xf32, #tpu.memory_space<vmem>>, vector<32x2xf32>
    %c32_47 = arith.constant 32 : index
    %c0_48 = arith.constant 0 : index
    %180 = vector.load %arg3[%c32_47, %c0_48] : memref<34x2xf32, #tpu.memory_space<vmem>>, vector<1x2xf32>
    %c33 = arith.constant 33 : index
    %c0_49 = arith.constant 0 : index
    %181 = vector.load %arg3[%c33, %c0_49] : memref<34x2xf32, #tpu.memory_space<vmem>>, vector<1x2xf32>
    %c0_50 = arith.constant 0 : index
    %c0_51 = arith.constant 0 : index
    %182 = vector.load %arg6[%c0_50, %c0_51] : memref<64x32xf32, #tpu.memory_space<vmem>>, vector<64x32xf32>
    %cst_52 = arith.constant dense<0.000000e+00> : vector<64x2xf32>
    %183 = tpu.matmul %182, %179, %cst_52 {dimension_numbers = #tpu.dot_dimension_numbers<[1], [0], [0], [1], [0, 0, 1, 1], [], []>} : vector<64x32xf32>, vector<32x2xf32>, vector<64x2xf32> -> vector<64x2xf32>
    %184 = vector.extract_strided_slice %3 {offsets = [0, 0], sizes = [64, 1], strides = [1, 1]} : vector<64x2xf32> to vector<64x1xf32>
    %185 = vector.broadcast %184 : vector<64x1xf32> to vector<64x2xf32>
    %186 = vector.broadcast %180 : vector<1x2xf32> to vector<64x2xf32>
    %187 = arith.mulf %185, %186 : vector<64x2xf32>
    %188 = arith.addf %183, %187 : vector<64x2xf32>
    %189 = vector.broadcast %181 : vector<1x2xf32> to vector<64x2xf32>
    %190 = arith.addf %188, %189 : vector<64x2xf32>
    %191 = tpu.iota {dimensions = array<i32: 1>} : vector<64x2xi32>
    %c1_i32 = arith.constant 1 : i32
    %192 = vector.broadcast %c1_i32 : i32 to vector<64x2xi32>
    %193 = arith.cmpi eq, %191, %192 : vector<64x2xi32>
    %194 = math.exp %190 : vector<64x2xf32>
    %195 = arith.select %193, %194, %190 : vector<64x2xi1>, vector<64x2xf32>
    %c0_53 = arith.constant 0 : index
    %c0_54 = arith.constant 0 : index
    %196 = vector.load %arg4[%c0_53, %c0_54] : memref<64x2xf32, #tpu.memory_space<vmem>>, vector<64x2xf32>
    tpu.vector_store %arg4[%c0_53, %c0_54], %195 {strides = array<i32>} : memref<64x2xf32, #tpu.memory_space<vmem>>, vector<64x2xf32>,
    return
  }
}

</mosaic_0001>

<llo_original>
// kernel: sequence_model_forward.1
$region0: #{sequence_model_forward.1}
  #allocation0 [shape = 'u32[]', space=smem, size = 0x4, offset = 0x4, fixed_abs, tag = 'smem constant byte address 0x4 - core index']
  #allocation1 [shape = 'u32[144,128]{1,0:T(1,128)}', space=vmem, size = 0x12000, scoped, tag = 'internal scratch']
  #allocation2 [shape = 'f32[64,32]{1,0:T(8,128)}', space=vmem, size = 0x8000, scoped, tag = 'scratch operand']
  %s0 = inlined_call_operand.vmem [shape: f32[64,2], index: 0, kind: input, shape index: {}]
  %s1 = inlined_call_operand.vmem [shape: f32[3,128], index: 1, kind: input, shape index: {}]
  %s2 = inlined_call_operand.vmem [shape: f32[32,128], index: 2, kind: input, shape index: {}]
  %s3 = inlined_call_operand.vmem [shape: f32[34,2], index: 3, kind: input, shape index: {}]
  %s4 = inlined_call_operand.vmem [shape: f32[64,2], index: 4, kind: output, shape index: {0}]
  %s5 = inlined_call_operand.vmem [shape: f32[2,8,32], index: 5, kind: output, shape index: {1}]
  %6 = xla_tuple %s4, %s5
  %s7 = sld [smem:[#allocation0]]
  $region34: #{sequence_model_forward.1} parent=0
    _
  %s9 = ssub.s32 1, %s7
  %s10 = scalar_select 0, %s9, %s7
  // Predicated region
  $region2: #{sequence_model_forward.1} parent=0 // pred_check
    _
  $region3: #{sequence_model_forward.1} parent=0 // pred_check_branch
    %12 = sbr.rel (0) target = $region5
  $region4: #{sequence_model_forward.1} parent=0 // pred_region
    _
  $region5: #{sequence_model_forward.1} parent=0 // pred_fallthru
    _
  // Predicated region
  $region6: #{sequence_model_forward.1} parent=0 // pred_check
    _
  $region7: #{sequence_model_forward.1} parent=0 // pred_check_branch
    %14 = sbr.rel (0) target = $region9
  $region8: #{sequence_model_forward.1} parent=0 // pred_region
    _
  $region9: #{sequence_model_forward.1} parent=0 // pred_fallthru
    _
  // Predicated region
  $region10: #{sequence_model_forward.1} parent=0 // pred_check
    _
  $region11: #{sequence_model_forward.1} parent=0 // pred_check_branch
    %16 = sbr.rel (0) target = $region13
  $region12: #{sequence_model_forward.1} parent=0 // pred_region
    _
  $region13: #{sequence_model_forward.1} parent=0 // pred_fallthru
    _
  // Predicated region
  $region14: #{sequence_model_forward.1} parent=0 // pred_check
    _
  $region15: #{sequence_model_forward.1} parent=0 // pred_check_branch
    %18 = sbr.rel (0) target = $region17
  $region16: #{sequence_model_forward.1} parent=0 // pred_region
    _
  $region17: #{sequence_model_forward.1} parent=0 // pred_fallthru
    _
  %v19 = vld [vmem:[%s2] sm:$0xff]
  %v20 = vld [vmem:[%s2 + $0x8] sm:$0xff]
  %v21 = vld [vmem:[%s2 + $0x10] sm:$0xff]
  %v22 = vld [vmem:[%s2 + $0x18] sm:$0xff]
  %v23 = vld [vmem:[%s1] sm:$0x3]
  %v24 = vld [vmem:[%s1 + $0x2] sm:$0x1]
  %v25 = vld [vmem:[%s0] sm:$0xff]
  %v26 = vld [vmem:[%s0 + $0x8] sm:$0xff]
  %v27 = vld [vmem:[%s0 + $0x10] sm:$0xff]
  %v28 = vld [vmem:[%s0 + $0x18] sm:$0xff]
  %v29 = vld [vmem:[%s0 + $0x20] sm:$0xff]
  %v30 = vld [vmem:[%s0 + $0x28] sm:$0xff]
  %v31 = vld [vmem:[%s0 + $0x30] sm:$0xff]
  %v32 = vld [vmem:[%s0 + $0x38] sm:$0xff]
  %vm33 = vcmask 15360
  %v35 = vsel %vm33, %v25, 0
  %v38 = vsel %vm33, %v26, 0
  %v41 = vsel %vm33, %v27, 0
  %v44 = vsel %vm33, %v28, 0
  %v47 = vsel %vm33, %v29, 0
  %v50 = vsel %vm33, %v30, 0
  %v53 = vsel %vm33, %v31, 0
  %v56 = vsel %vm33, %v32, 0
  %vm58 = vcmask 1041408
  %v60 = vsel %vm58, %v23, 0
  %62 = vmatprep.subr.mxu0 0.0
  %63 = vmatpush1.msra.mxu0 %v60
  %64 = vmatprep.subr.mxu0 0.0
  %65 = vmatpush1.msra.mxu0 0.0
  %66 = vmatprep.subr.mxu0 0.0
  %67 = vmatpush1.msra.mxu0 0.0
  %68 = vmatprep.subr.mxu0 0.0
  %69 = vmatpush1.msra.mxu0 0.0
  %70 = vmatprep.subr.mxu0 0.0
  %71 = vmatpush1.msra.mxu0 0.0
  %72 = vmatprep.subr.mxu0 0.0
  %73 = vmatpush1.msra.mxu0 0.0
  %74 = vmatprep.subr.mxu0 0.0
  %75 = vmatpush1.msra.mxu0 0.0
  %76 = vmatprep.subr.mxu0 0.0
  %77 = vmatpush1.msra.mxu0 0.0
  %78 = vmatprep.subr.mxu0 0.0
  %79 = vmatpush1.msra.mxu0 0.0
  %80 = vmatprep.subr.mxu0 0.0
  %81 = vmatpush1.msra.mxu0 0.0
  %82 = vmatprep.subr.mxu0 0.0
  %83 = vmatpush1.msra.mxu0 0.0
  %84 = vmatprep.subr.mxu0 0.0
  %85 = vmatpush1.msra.mxu0 0.0
  %86 = vmatprep.subr.mxu0 0.0
  %87 = vmatpush1.msra.mxu0 0.0
  %88 = vmatprep.subr.mxu0 0.0
  %89 = vmatpush1.msra.mxu0 0.0
  %90 = vmatprep.subr.mxu0 0.0
  %91 = vmatpush1.msra.mxu0 0.0
  %92 = vmatprep.subr.mxu0 0.0
  %93 = vmatpush1.msra.mxu0 0.0
  %94 = vmatprep.subr.mxu0 0.0
  %95 = vmatpush1.msra.mxu0 0.0
  %96 = vmatprep.subr.mxu0 0.0
  %97 = vmatpush1.msra.mxu0 0.0
  %98 = vmatprep.subr.mxu0 0.0
  %99 = vmatpush1.msra.mxu0 0.0
  %100 = vmatprep.subr.mxu0 0.0
  %101 = vmatpush1.msra.mxu0 0.0
  %102 = vmatprep.subr.mxu0 0.0
  %103 = vmatpush1.msra.mxu0 0.0
  %104 = vmatprep.subr.mxu0 0.0
  %105 = vmatpush1.msra.mxu0 0.0
  %106 = vmatprep.subr.mxu0 0.0
  %107 = vmatpush1.msra.mxu0 0.0
  %108 = vmatprep.subr.mxu0 0.0
  %109 = vmatpush1.msra.mxu0 0.0
  %110 = vmatprep.subr.mxu0 0.0
  %111 = vmatpush1.msra.mxu0 0.0
  %112 = vmatprep.subr.mxu0 0.0
  %113 = vmatpush1.msra.mxu0 0.0
  %114 = vmatprep.subr.mxu0 0.0
  %115 = vmatpush1.msra.mxu0 0.0
  %116 = vmatprep.subr.mxu0 0.0
  %117 = vmatpush1.msra.mxu0 0.0
  %118 = vmatprep.subr.mxu0 0.0
  %119 = vmatpush1.msra.mxu0 0.0
  %120 = vmatprep.subr.mxu0 0.0
  %121 = vmatpush1.msra.mxu0 0.0
  %122 = vmatprep.subr.mxu0 0.0
  %123 = vmatpush1.msra.mxu0 0.0
  %124 = vmatprep.subr.mxu0 0.0
  %125 = vmatpush1.msra.mxu0 0.0
  %126 = vmatprep.mubr.f32.mxu0 0.0
  %127 = vmatmul.mubr.f32.gmra.mrb[0].mxu0 %v35
  %v128 = vpop.f32.mrb[0].mxu0
  %v129 = vadd.f32 0.0, %v128
  %v130 = vpop.f32.mrb[0].mxu0
  %131 = vmatprep.mubr.f32.mxu0 0.0
  %132 = vmatmul.mubr.f32.gmra.mrb[0].mxu0 %v38
  %v133 = vpop.f32.mrb[0].mxu0
  %v134 = vadd.f32 0.0, %v133
  %v135 = vpop.f32.mrb[0].mxu0
  %136 = vmatprep.mubr.f32.mxu0 0.0
  %137 = vmatmul.mubr.f32.gmra.mrb[0].mxu0 %v41
  %v138 = vpop.f32.mrb[0].mxu0
  %v139 = vadd.f32 0.0, %v138
  %v140 = vpop.f32.mrb[0].mxu0
  %141 = vmatprep.mubr.f32.mxu0 0.0
  %142 = vmatmul.mubr.f32.gmra.mrb[0].mxu0 %v44
  %v143 = vpop.f32.mrb[0].mxu0
  %v144 = vadd.f32 0.0, %v143
  %v145 = vpop.f32.mrb[0].mxu0
  %146 = vmatprep.mubr.f32.mxu0 0.0
  %147 = vmatmul.mubr.f32.gmra.mrb[0].mxu0 %v47
  %v148 = vpop.f32.mrb[0].mxu0
  %v149 = vadd.f32 0.0, %v148
  %v150 = vpop.f32.mrb[0].mxu0
  %151 = vmatprep.mubr.f32.mxu0 0.0
  %152 = vmatmul.mubr.f32.gmra.mrb[0].mxu0 %v50
  %v153 = vpop.f32.mrb[0].mxu0
  %v154 = vadd.f32 0.0, %v153
  %v155 = vpop.f32.mrb[0].mxu0
  %156 = vmatprep.mubr.f32.mxu0 0.0
  %157 = vmatmul.mubr.f32.gmra.mrb[0].mxu0 %v53
  %v158 = vpop.f32.mrb[0].mxu0
  %v159 = vadd.f32 0.0, %v158
  %v160 = vpop.f32.mrb[0].mxu0
  %161 = vmatprep.mubr.f32.mxu0 0.0
  %162 = vmatmul.mubr.f32.gmra.mrb[0].mxu0 %v56
  %v163 = vpop.f32.mrb[0].mxu0
  %v164 = vadd.f32 0.0, %v163
  %v165 = vpop.f32.mrb[0].mxu0
  %166 = vdwg.mxu0
  %v167 = vlaneseq
  %v168 = vshrl.u32 %v167, 7
  %v169 = vsub.s32 0, %v168
  %v170 = vrot.slane %v24, %v169
  %v171 = vadd.f32 %v129, %v170
  %v172 = vadd.f32 %v134, %v170
  %v173 = vadd.f32 %v139, %v170
  %v174 = vadd.f32 %v144, %v170
  %v175 = vadd.f32 %v149, %v170
  %v176 = vadd.f32 %v154, %v170
  %v177 = vadd.f32 %v159, %v170
  %v178 = vadd.f32 %v164, %v170
  %v179 = vlaneseq
  %v180 = vand.u32 %v179, 127
  %vm181 = vcmp.ge.s32.totalorder %v180, 64
  %vm182 = vcmp.lt.s32.totalorder %v180, 96
  %vm183 = vmand %vm181, %vm182
  %v184 = vsel %vm183, 1.0, 0.5
  %v185 = vmul.f32 %v171, %v184
  %v186 = vtanh.pop %v185
  %v187 = vadd.f32 %v186, 1.0
  %v188 = vmul.f32 %v187, 0.5
  %190 = vrot.lane.b32.xlu0 %v186, 64
  %v191 = vpop.permute.xlu0 %190
  %v193 = vmul.f32 %v188, %v191
  %v194 = vtanh.pop %v193
  %196 = vrot.lane.b32.xlu0 %v194, 96
  %v197 = vpop.permute.xlu0 %196
  %v199 = vmul.f32 %v188, %v197
  %201 = vrot.lane.b32.xlu0 %v199, 32
  %v202 = vpop.permute.xlu0 %201
  %vm204 = vcmask 261120
  %205 = vst.msk [vmem:[#allocation2] sm:$0xff] %vm204, %v202
  %v206 = vsel %vm204, %v202, 0
  %208 = vmatprep.subr.mxu0 0.0
  %209 = vmatpush1.msra.mxu0 %v19
  %210 = vmatprep.subr.mxu0 0.0
  %211 = vmatpush1.msra.mxu0 %v20
  %212 = vmatprep.subr.mxu0 0.0
  %213 = vmatpush1.msra.mxu0 %v21
  %214 = vmatprep.subr.mxu0 0.0
  %215 = vmatpush1.msra.mxu0 %v22
  %216 = vmatprep.subr.mxu0 0.0
  %217 = vmatpush1.msra.mxu0 0.0
  %218 = vmatprep.subr.mxu0 0.0
  %219 = vmatpush1.msra.mxu0 0.0
  %220 = vmatprep.subr.mxu0 0.0
  %221 = vmatpush1.msra.mxu0 0.0
  %222 = vmatprep.subr.mxu0 0.0
  %223 = vmatpush1.msra.mxu0 0.0
  %224 = vmatprep.subr.mxu0 0.0
  %225 = vmatpush1.msra.mxu0 0.0
  %226 = vmatprep.subr.mxu0 0.0
  %227 = vmatpush1.msra.mxu0 0.0
  %228 = vmatprep.subr.mxu0 0.0
  %229 = vmatpush1.msra.mxu0 0.0
  %230 = vmatprep.subr.mxu0 0.0
  %231 = vmatpush1.msra.mxu0 0.0
  %232 = vmatprep.subr.mxu0 0.0
  %233 = vmatpush1.msra.mxu0 0.0
  %234 = vmatprep.subr.mxu0 0.0
  %235 = vmatpush1.msra.mxu0 0.0
  %236 = vmatprep.subr.mxu0 0.0
  %237 = vmatpush1.msra.mxu0 0.0
  %238 = vmatprep.subr.mxu0 0.0
  %239 = vmatpush1.msra.mxu0 0.0
  %240 = vmatprep.subr.mxu0 0.0
  %241 = vmatpush1.msra.mxu0 0.0
  %242 = vmatprep.subr.mxu0 0.0
  %243 = vmatpush1.msra.mxu0 0.0
  %244 = vmatprep.subr.mxu0 0.0
  %245 = vmatpush1.msra.mxu0 0.0
  %246 = vmatprep.subr.mxu0 0.0
  %247 = vmatpush1.msra.mxu0 0.0
  %248 = vmatprep.subr.mxu0 0.0
  %249 = vmatpush1.msra.mxu0 0.0
  %250 = vmatprep.subr.mxu0 0.0
  %251 = vmatpush1.msra.mxu0 0.0
  %252 = vmatprep.subr.mxu0 0.0
  %253 = vmatpush1.msra.mxu0 0.0
  %254 = vmatprep.subr.mxu0 0.0
  %255 = vmatpush1.msra.mxu0 0.0
  %256 = vmatprep.subr.mxu0 0.0
  %257 = vmatpush1.msra.mxu0 0.0
  %258 = vmatprep.subr.mxu0 0.0
  %259 = vmatpush1.msra.mxu0 0.0
  %260 = vmatprep.subr.mxu0 0.0
  %261 = vmatpush1.msra.mxu0 0.0
  %262 = vmatprep.subr.mxu0 0.0
  %263 = vmatpush1.msra.mxu0 0.0
  %264 = vmatprep.subr.mxu0 0.0
  %265 = vmatpush1.msra.mxu0 0.0
  %266 = vmatprep.subr.mxu0 0.0
  %267 = vmatpush1.msra.mxu0 0.0
  %268 = vmatprep.subr.mxu0 0.0
  %269 = vmatpush1.msra.mxu0 0.0
  %270 = vmatprep.subr.mxu0 0.0
  %271 = vmatpush1.msra.mxu0 0.0
  %272 = vmatprep.mubr.f32.mxu0 0.0
  %273 = vmatmul.mubr.f32.gmra.mrb[0].mxu0 %v206
  %v274 = vpop.f32.mrb[0].mxu0
  %v275 = vadd.f32 0.0, %v274
  %v276 = vpop.f32.mrb[0].mxu0
  %277 = vdwg.mxu0
  %v278 = vadd.f32 %v172, %v275
  %v279 = vmul.f32 %v278, %v184
  %v280 = vtanh.pop %v279
  %v281 = vadd.f32 %v280, 1.0
  %v282 = vmul.f32 %v281, 0.5
  %284 = vrot.lane.b32.xlu0 %v193, 32
  %v285 = vpop.permute.xlu0 %284
  %v287 = vmul.f32 %v282, %v285
  %289 = vrot.lane.b32.xlu0 %v280, 64
  %v290 = vpop.permute.xlu0 %289
  %v292 = vmul.f32 %v282, %v290
  %294 = vrot.lane.b32.xlu0 %v292, 32
  %v295 = vpop.permute.xlu0 %294
  %v297 = vadd.f32 %v287, %v295
  %v298 = vtanh.pop %v297
  %300 = vrot.lane.b32.xlu0 %v298, 64
  %v301 = vpop.permute.xlu0 %300
  %v303 = vmul.f32 %v282, %v301
  %305 = vrot.lane.b32.xlu0 %v303, 32
  %v306 = vpop.permute.xlu0 %305
  %308 = vst.msk [vmem:[#allocation2 + $0x8] sm:$0xff] %vm204, %v306
  %v309 = vsel %vm204, %v306, 0
  %311 = vmatprep.subr.mxu0 0.0
  %312 = vmatpush1.msra.mxu0 %v19
  %313 = vmatprep.subr.mxu0 0.0
  %314 = vmatpush1.msra.mxu0 %v20
  %315 = vmatprep.subr.mxu0 0.0
  %316 = vmatpush1.msra.mxu0 %v21
  %317 = vmatprep.subr.mxu0 0.0
  %318 = vmatpush1.msra.mxu0 %v22
  %319 = vmatprep.subr.mxu0 0.0
  %320 = vmatpush1.msra.mxu0 0.0
  %321 = vmatprep.subr.mxu0 0.0
  %322 = vmatpush1.msra.mxu0 0.0
  %323 = vmatprep.subr.mxu0 0.0
  %324 = vmatpush1.msra.mxu0 0.0
  %325 = vmatprep.subr.mxu0 0.0
  %326 = vmatpush1.msra.mxu0 0.0
  %327 = vmatprep.subr.mxu0 0.0
  %328 = vmatpush1.msra.mxu0 0.0
  %329 = vmatprep.subr.mxu0 0.0
  %330 = vmatpush1.msra.mxu0 0.0
  %331 = vmatprep.subr.mxu0 0.0
  %332 = vmatpush1.msra.mxu0 0.0
  %333 = vmatprep.subr.mxu0 0.0
  %334 = vmatpush1.msra.mxu0 0.0
  %335 = vmatprep.subr.mxu0 0.0
  %336 = vmatpush1.msra.mxu0 0.0
  %337 = vmatprep.subr.mxu0 0.0
  %338 = vmatpush1.msra.mxu0 0.0
  %339 = vmatprep.subr.mxu0 0.0
  %340 = vmatpush1.msra.mxu0 0.0
  %341 = vmatprep.subr.mxu0 0.0
  %342 = vmatpush1.msra.mxu0 0.0
  %343 = vmatprep.subr.mxu0 0.0
  %344 = vmatpush1.msra.mxu0 0.0
  %345 = vmatprep.subr.mxu0 0.0
  %346 = vmatpush1.msra.mxu0 0.0
  %347 = vmatprep.subr.mxu0 0.0
  %348 = vmatpush1.msra.mxu0 0.0
  %349 = vmatprep.subr.mxu0 0.0
  %350 = vmatpush1.msra.mxu0 0.0
  %351 = vmatprep.subr.mxu0 0.0
  %352 = vmatpush1.msra.mxu0 0.0
  %353 = vmatprep.subr.mxu0 0.0
  %354 = vmatpush1.msra.mxu0 0.0
  %355 = vmatprep.subr.mxu0 0.0
  %356 = vmatpush1.msra.mxu0 0.0
  %357 = vmatprep.subr.mxu0 0.0
  %358 = vmatpush1.msra.mxu0 0.0
  %359 = vmatprep.subr.mxu0 0.0
  %360 = vmatpush1.msra.mxu0 0.0
  %361 = vmatprep.subr.mxu0 0.0
  %362 = vmatpush1.msra.mxu0 0.0
  %363 = vmatprep.subr.mxu0 0.0
  %364 = vmatpush1.msra.mxu0 0.0
  %365 = vmatprep.subr.mxu0 0.0
  %366 = vmatpush1.msra.mxu0 0.0
  %367 = vmatprep.subr.mxu0 0.0
  %368 = vmatpush1.msra.mxu0 0.0
  %369 = vmatprep.subr.mxu0 0.0
  %370 = vmatpush1.msra.mxu0 0.0
  %371 = vmatprep.subr.mxu0 0.0
  %372 = vmatpush1.msra.mxu0 0.0
  %373 = vmatprep.subr.mxu0 0.0
  %374 = vmatpush1.msra.mxu0 0.0
  %375 = vmatprep.mubr.f32.mxu0 0.0
  %376 = vmatmul.mubr.f32.gmra.mrb[0].mxu0 %v309
  %v377 = vpop.f32.mrb[0].mxu0
  %v378 = vadd.f32 0.0, %v377
  %v379 = vpop.f32.mrb[0].mxu0
  %380 = vdwg.mxu0
  %v381 = vadd.f32 %v173, %v378
  %v382 = vmul.f32 %v381, %v184
  %v383 = vtanh.pop %v382
  %v384 = vadd.f32 %v383, 1.0
  %v385 = vmul.f32 %v384, 0.5
  %v386 = vmul.f32 %v385, %v297
  %388 = vrot.lane.b32.xlu0 %v383, 64
  %v389 = vpop.permute.xlu0 %388
  %v391 = vmul.f32 %v385, %v389
  %393 = vrot.lane.b32.xlu0 %v391, 32
  %v394 = vpop.permute.xlu0 %393
  %v396 = vadd.f32 %v386, %v394
  %v397 = vtanh.pop %v396
  %399 = vrot.lane.b32.xlu0 %v397, 64
  %v400 = vpop.permute.xlu0 %399
  %v402 = vmul.f32 %v385, %v400
  %404 = vrot.lane.b32.xlu0 %v402, 32
  %v405 = vpop.permute.xlu0 %404
  %407 = vst.msk [vmem:[#allocation2 + $0x10] sm:$0xff] %vm204, %v405
  %v408 = vsel %vm204, %v405, 0
  %410 = vmatprep.subr.mxu0 0.0
  %411 = vmatpush1.msra.mxu0 %v19
  %412 = vmatprep.subr.mxu0 0.0
  %413 = vmatpush1.msra.mxu0 %v20
  %414 = vmatprep.subr.mxu0 0.0
  %415 = vmatpush1.msra.mxu0 %v21
  %416 = vmatprep.subr.mxu0 0.0
  %417 = vmatpush1.msra.mxu0 %v22
  %418 = vmatprep.subr.mxu0 0.0
  %419 = vmatpush1.msra.mxu0 0.0
  %420 = vmatprep.subr.mxu0 0.0
  %421 = vmatpush1.msra.mxu0 0.0
  %422 = vmatprep.subr.mxu0 0.0
  %423 = vmatpush1.msra.mxu0 0.0
  %424 = vmatprep.subr.mxu0 0.0
  %425 = vmatpush1.msra.mxu0 0.0
  %426 = vmatprep.subr.mxu0 0.0
  %427 = vmatpush1.msra.mxu0 0.0
  %428 = vmatprep.subr.mxu0 0.0
  %429 = vmatpush1.msra.mxu0 0.0
  %430 = vmatprep.subr.mxu0 0.0
  %431 = vmatpush1.msra.mxu0 0.0
  %432 = vmatprep.subr.mxu0 0.0
  %433 = vmatpush1.msra.mxu0 0.0
  %434 = vmatprep.subr.mxu0 0.0
  %435 = vmatpush1.msra.mxu0 0.0
  %436 = vmatprep.subr.mxu0 0.0
  %437 = vmatpush1.msra.mxu0 0.0
  %438 = vmatprep.subr.mxu0 0.0
  %439 = vmatpush1.msra.mxu0 0.0
  %440 = vmatprep.subr.mxu0 0.0
  %441 = vmatpush1.msra.mxu0 0.0
  %442 = vmatprep.subr.mxu0 0.0
  %443 = vmatpush1.msra.mxu0 0.0
  %444 = vmatprep.subr.mxu0 0.0
  %445 = vmatpush1.msra.mxu0 0.0
  %446 = vmatprep.subr.mxu0 0.0
  %447 = vmatpush1.msra.mxu0 0.0
  %448 = vmatprep.subr.mxu0 0.0
  %449 = vmatpush1.msra.mxu0 0.0
  %450 = vmatprep.subr.mxu0 0.0
  %451 = vmatpush1.msra.mxu0 0.0
  %452 = vmatprep.subr.mxu0 0.0
  %453 = vmatpush1.msra.mxu0 0.0
  %454 = vmatprep.subr.mxu0 0.0
  %455 = vmatpush1.msra.mxu0 0.0
  %456 = vmatprep.subr.mxu0 0.0
  %457 = vmatpush1.msra.mxu0 0.0
  %458 = vmatprep.subr.mxu0 0.0
  %459 = vmatpush1.msra.mxu0 0.0
  %460 = vmatprep.subr.mxu0 0.0
  %461 = vmatpush1.msra.mxu0 0.0
  %462 = vmatprep.subr.mxu0 0.0
  %463 = vmatpush1.msra.mxu0 0.0
  %464 = vmatprep.subr.mxu0 0.0
  %465 = vmatpush1.msra.mxu0 0.0
  %466 = vmatprep.subr.mxu0 0.0
  %467 = vmatpush1.msra.mxu0 0.0
  %468 = vmatprep.subr.mxu0 0.0
  %469 = vmatpush1.msra.mxu0 0.0
  %470 = vmatprep.subr.mxu0 0.0
  %471 = vmatpush1.msra.mxu0 0.0
  %472 = vmatprep.subr.mxu0 0.0
  %473 = vmatpush1.msra.mxu0 0.0
  %474 = vmatprep.mubr.f32.mxu0 0.0
  %475 = vmatmul.mubr.f32.gmra.mrb[0].mxu0 %v408
  %v476 = vpop.f32.mrb[0].mxu0
  %v477 = vadd.f32 0.0, %v476
  %v478 = vpop.f32.mrb[0].mxu0
  %479 = vdwg.mxu0
  %v480 = vadd.f32 %v174, %v477
  %v481 = vmul.f32 %v480, %v184
  %v482 = vtanh.pop %v481
  %v483 = vadd.f32 %v482, 1.0
  %v484 = vmul.f32 %v483, 0.5
  %v485 = vmul.f32 %v484, %v396
  %487 = vrot.lane.b32.xlu0 %v482, 64
  %v488 = vpop.permute.xlu0 %487
  %v490 = vmul.f32 %v484, %v488
  %492 = vrot.lane.b32.xlu0 %v490, 32
  %v493 = vpop.permute.xlu0 %492
  %v495 = vadd.f32 %v485, %v493
  %v496 = vtanh.pop %v495
  %498 = vrot.lane.b32.xlu0 %v496, 64
  %v499 = vpop.permute.xlu0 %498
  %v501 = vmul.f32 %v484, %v499
  %503 = vrot.lane.b32.xlu0 %v501, 32
  %v504 = vpop.permute.xlu0 %503
  %506 = vst.msk [vmem:[#allocation2 + $0x18] sm:$0xff] %vm204, %v504
  %v507 = vsel %vm204, %v504, 0
  %509 = vmatprep.subr.mxu0 0.0
  %510 = vmatpush1.msra.mxu0 %v19
  %511 = vmatprep.subr.mxu0 0.0
  %512 = vmatpush1.msra.mxu0 %v20
  %513 = vmatprep.subr.mxu0 0.0
  %514 = vmatpush1.msra.mxu0 %v21
  %515 = vmatprep.subr.mxu0 0.0
  %516 = vmatpush1.msra.mxu0 %v22
  %517 = vmatprep.subr.mxu0 0.0
  %518 = vmatpush1.msra.mxu0 0.0
  %519 = vmatprep.subr.mxu0 0.0
  %520 = vmatpush1.msra.mxu0 0.0
  %521 = vmatprep.subr.mxu0 0.0
  %522 = vmatpush1.msra.mxu0 0.0
  %523 = vmatprep.subr.mxu0 0.0
  %524 = vmatpush1.msra.mxu0 0.0
  %525 = vmatprep.subr.mxu0 0.0
  %526 = vmatpush1.msra.mxu0 0.0
  %527 = vmatprep.subr.mxu0 0.0
  %528 = vmatpush1.msra.mxu0 0.0
  %529 = vmatprep.subr.mxu0 0.0
  %530 = vmatpush1.msra.mxu0 0.0
  %531 = vmatprep.subr.mxu0 0.0
  %532 = vmatpush1.msra.mxu0 0.0
  %533 = vmatprep.subr.mxu0 0.0
  %534 = vmatpush1.msra.mxu0 0.0
  %535 = vmatprep.subr.mxu0 0.0
  %536 = vmatpush1.msra.mxu0 0.0
  %537 = vmatprep.subr.mxu0 0.0
  %538 = vmatpush1.msra.mxu0 0.0
  %539 = vmatprep.subr.mxu0 0.0
  %540 = vmatpush1.msra.mxu0 0.0
  %541 = vmatprep.subr.mxu0 0.0
  %542 = vmatpush1.msra.mxu0 0.0
  %543 = vmatprep.subr.mxu0 0.0
  %544 = vmatpush1.msra.mxu0 0.0
  %545 = vmatprep.subr.mxu0 0.0
  %546 = vmatpush1.msra.mxu0 0.0
  %547 = vmatprep.subr.mxu0 0.0
  %548 = vmatpush1.msra.mxu0 0.0
  %549 = vmatprep.subr.mxu0 0.0
  %550 = vmatpush1.msra.mxu0 0.0
  %551 = vmatprep.subr.mxu0 0.0
  %552 = vmatpush1.msra.mxu0 0.0
  %553 = vmatprep.subr.mxu0 0.0
  %554 = vmatpush1.msra.mxu0 0.0
  %555 = vmatprep.subr.mxu0 0.0
  %556 = vmatpush1.msra.mxu0 0.0
  %557 = vmatprep.subr.mxu0 0.0
  %558 = vmatpush1.msra.mxu0 0.0
  %559 = vmatprep.subr.mxu0 0.0
  %560 = vmatpush1.msra.mxu0 0.0
  %561 = vmatprep.subr.mxu0 0.0
  %562 = vmatpush1.msra.mxu0 0.0
  %563 = vmatprep.subr.mxu0 0.0
  %564 = vmatpush1.msra.mxu0 0.0
  %565 = vmatprep.subr.mxu0 0.0
  %566 = vmatpush1.msra.mxu0 0.0
  %567 = vmatprep.subr.mxu0 0.0
  %568 = vmatpush1.msra.mxu0 0.0
  %569 = vmatprep.subr.mxu0 0.0
  %570 = vmatpush1.msra.mxu0 0.0
  %571 = vmatprep.subr.mxu0 0.0
  %572 = vmatpush1.msra.mxu0 0.0
  %573 = vmatprep.mubr.f32.mxu0 0.0
  %574 = vmatmul.mubr.f32.gmra.mrb[0].mxu0 %v507
  %v575 = vpop.f32.mrb[0].mxu0
  %v576 = vadd.f32 0.0, %v575
  %v577 = vpop.f32.mrb[0].mxu0
  %578 = vdwg.mxu0
  %v579 = vadd.f32 %v175, %v576
  %v580 = vmul.f32 %v579, %v184
  %v581 = vtanh.pop %v580
  %v582 = vadd.f32 %v581, 1.0
  %v583 = vmul.f32 %v582, 0.5
  %v584 = vmul.f32 %v583, %v495
  %586 = vrot.lane.b32.xlu0 %v581, 64
  %v587 = vpop.permute.xlu0 %586
  %v589 = vmul.f32 %v583, %v587
  %591 = vrot.lane.b32.xlu0 %v589, 32
  %v592 = vpop.permute.xlu0 %591
  %v594 = vadd.f32 %v584, %v592
  %v595 = vtanh.pop %v594
  %597 = vrot.lane.b32.xlu0 %v595, 64
  %v598 = vpop.permute.xlu0 %597
  %v600 = vmul.f32 %v583, %v598
  %602 = vrot.lane.b32.xlu0 %v600, 32
  %v603 = vpop.permute.xlu0 %602
  %605 = vst.msk [vmem:[#allocation2 + $0x20] sm:$0xff] %vm204, %v603
  %v606 = vsel %vm204, %v603, 0
  %608 = vmatprep.subr.mxu0 0.0
  %609 = vmatpush1.msra.mxu0 %v19
  %610 = vmatprep.subr.mxu0 0.0
  %611 = vmatpush1.msra.mxu0 %v20
  %612 = vmatprep.subr.mxu0 0.0
  %613 = vmatpush1.msra.mxu0 %v21
  %614 = vmatprep.subr.mxu0 0.0
  %615 = vmatpush1.msra.mxu0 %v22
  %616 = vmatprep.subr.mxu0 0.0
  %617 = vmatpush1.msra.mxu0 0.0
  %618 = vmatprep.subr.mxu0 0.0
  %619 = vmatpush1.msra.mxu0 0.0
  %620 = vmatprep.subr.mxu0 0.0
  %621 = vmatpush1.msra.mxu0 0.0
  %622 = vmatprep.subr.mxu0 0.0
  %623 = vmatpush1.msra.mxu0 0.0
  %624 = vmatprep.subr.mxu0 0.0
  %625 = vmatpush1.msra.mxu0 0.0
  %626 = vmatprep.subr.mxu0 0.0
  %627 = vmatpush1.msra.mxu0 0.0
  %628 = vmatprep.subr.mxu0 0.0
  %629 = vmatpush1.msra.mxu0 0.0
  %630 = vmatprep.subr.mxu0 0.0
  %631 = vmatpush1.msra.mxu0 0.0
  %632 = vmatprep.subr.mxu0 0.0
  %633 = vmatpush1.msra.mxu0 0.0
  %634 = vmatprep.subr.mxu0 0.0
  %635 = vmatpush1.msra.mxu0 0.0
  %636 = vmatprep.subr.mxu0 0.0
  %637 = vmatpush1.msra.mxu0 0.0
  %638 = vmatprep.subr.mxu0 0.0
  %639 = vmatpush1.msra.mxu0 0.0
  %640 = vmatprep.subr.mxu0 0.0
  %641 = vmatpush1.msra.mxu0 0.0
  %642 = vmatprep.subr.mxu0 0.0
  %643 = vmatpush1.msra.mxu0 0.0
  %644 = vmatprep.subr.mxu0 0.0
  %645 = vmatpush1.msra.mxu0 0.0
  %646 = vmatprep.subr.mxu0 0.0
  %647 = vmatpush1.msra.mxu0 0.0
  %648 = vmatprep.subr.mxu0 0.0
  %649 = vmatpush1.msra.mxu0 0.0
  %650 = vmatprep.subr.mxu0 0.0
  %651 = vmatpush1.msra.mxu0 0.0
  %652 = vmatprep.subr.mxu0 0.0
  %653 = vmatpush1.msra.mxu0 0.0
  %654 = vmatprep.subr.mxu0 0.0
  %655 = vmatpush1.msra.mxu0 0.0
  %656 = vmatprep.subr.mxu0 0.0
  %657 = vmatpush1.msra.mxu0 0.0
  %658 = vmatprep.subr.mxu0 0.0
  %659 = vmatpush1.msra.mxu0 0.0
  %660 = vmatprep.subr.mxu0 0.0
  %661 = vmatpush1.msra.mxu0 0.0
  %662 = vmatprep.subr.mxu0 0.0
  %663 = vmatpush1.msra.mxu0 0.0
  %664 = vmatprep.subr.mxu0 0.0
  %665 = vmatpush1.msra.mxu0 0.0
  %666 = vmatprep.subr.mxu0 0.0
  %667 = vmatpush1.msra.mxu0 0.0
  %668 = vmatprep.subr.mxu0 0.0
  %669 = vmatpush1.msra.mxu0 0.0
  %670 = vmatprep.subr.mxu0 0.0
  %671 = vmatpush1.msra.mxu0 0.0
  %672 = vmatprep.mubr.f32.mxu0 0.0
  %673 = vmatmul.mubr.f32.gmra.mrb[0].mxu0 %v606
  %v674 = vpop.f32.mrb[0].mxu0
  %v675 = vadd.f32 0.0, %v674
  %v676 = vpop.f32.mrb[0].mxu0
  %677 = vdwg.mxu0
  %v678 = vadd.f32 %v176, %v675
  %v679 = vmul.f32 %v678, %v184
  %v680 = vtanh.pop %v679
  %v681 = vadd.f32 %v680, 1.0
  %v682 = vmul.f32 %v681, 0.5
  %v683 = vmul.f32 %v682, %v594
  %685 = vrot.lane.b32.xlu0 %v680, 64
  %v686 = vpop.permute.xlu0 %685
  %v688 = vmul.f32 %v682, %v686
  %690 = vrot.lane.b32.xlu0 %v688, 32
  %v691 = vpop.permute.xlu0 %690
  %v693 = vadd.f32 %v683, %v691
  %v694 = vtanh.pop %v693
  %696 = vrot.lane.b32.xlu0 %v694, 64
  %v697 = vpop.permute.xlu0 %696
  %v699 = vmul.f32 %v682, %v697
  %701 = vrot.lane.b32.xlu0 %v699, 32
  %v702 = vpop.permute.xlu0 %701
  %704 = vst.msk [vmem:[#allocation2 + $0x28] sm:$0xff] %vm204, %v702
  %v705 = vsel %vm204, %v702, 0
  %707 = vmatprep.subr.mxu0 0.0
  %708 = vmatpush1.msra.mxu0 %v19
  %709 = vmatprep.subr.mxu0 0.0
  %710 = vmatpush1.msra.mxu0 %v20
  %711 = vmatprep.subr.mxu0 0.0
  %712 = vmatpush1.msra.mxu0 %v21
  %713 = vmatprep.subr.mxu0 0.0
  %714 = vmatpush1.msra.mxu0 %v22
  %715 = vmatprep.subr.mxu0 0.0
  %716 = vmatpush1.msra.mxu0 0.0
  %717 = vmatprep.subr.mxu0 0.0
  %718 = vmatpush1.msra.mxu0 0.0
  %719 = vmatprep.subr.mxu0 0.0
  %720 = vmatpush1.msra.mxu0 0.0
  %721 = vmatprep.subr.mxu0 0.0
  %722 = vmatpush1.msra.mxu0 0.0
  %723 = vmatprep.subr.mxu0 0.0
  %724 = vmatpush1.msra.mxu0 0.0
  %725 = vmatprep.subr.mxu0 0.0
  %726 = vmatpush1.msra.mxu0 0.0
  %727 = vmatprep.subr.mxu0 0.0
  %728 = vmatpush1.msra.mxu0 0.0
  %729 = vmatprep.subr.mxu0 0.0
  %730 = vmatpush1.msra.mxu0 0.0
  %731 = vmatprep.subr.mxu0 0.0
  %732 = vmatpush1.msra.mxu0 0.0
  %733 = vmatprep.subr.mxu0 0.0
  %734 = vmatpush1.msra.mxu0 0.0
  %735 = vmatprep.subr.mxu0 0.0
  %736 = vmatpush1.msra.mxu0 0.0
  %737 = vmatprep.subr.mxu0 0.0
  %738 = vmatpush1.msra.mxu0 0.0
  %739 = vmatprep.subr.mxu0 0.0
  %740 = vmatpush1.msra.mxu0 0.0
  %741 = vmatprep.subr.mxu0 0.0
  %742 = vmatpush1.msra.mxu0 0.0
  %743 = vmatprep.subr.mxu0 0.0
  %744 = vmatpush1.msra.mxu0 0.0
  %745 = vmatprep.subr.mxu0 0.0
  %746 = vmatpush1.msra.mxu0 0.0
  %747 = vmatprep.subr.mxu0 0.0
  %748 = vmatpush1.msra.mxu0 0.0
  %749 = vmatprep.subr.mxu0 0.0
  %750 = vmatpush1.msra.mxu0 0.0
  %751 = vmatprep.subr.mxu0 0.0
  %752 = vmatpush1.msra.mxu0 0.0
  %753 = vmatprep.subr.mxu0 0.0
  %754 = vmatpush1.msra.mxu0 0.0
  %755 = vmatprep.subr.mxu0 0.0
  %756 = vmatpush1.msra.mxu0 0.0
  %757 = vmatprep.subr.mxu0 0.0
  %758 = vmatpush1.msra.mxu0 0.0
  %759 = vmatprep.subr.mxu0 0.0
  %760 = vmatpush1.msra.mxu0 0.0
  %761 = vmatprep.subr.mxu0 0.0
  %762 = vmatpush1.msra.mxu0 0.0
  %763 = vmatprep.subr.mxu0 0.0
  %764 = vmatpush1.msra.mxu0 0.0
  %765 = vmatprep.subr.mxu0 0.0
  %766 = vmatpush1.msra.mxu0 0.0
  %767 = vmatprep.subr.mxu0 0.0
  %768 = vmatpush1.msra.mxu0 0.0
  %769 = vmatprep.subr.mxu0 0.0
  %770 = vmatpush1.msra.mxu0 0.0
  %771 = vmatprep.mubr.f32.mxu0 0.0
  %772 = vmatmul.mubr.f32.gmra.mrb[0].mxu0 %v705
  %v773 = vpop.f32.mrb[0].mxu0
  %v774 = vadd.f32 0.0, %v773
  %v775 = vpop.f32.mrb[0].mxu0
  %776 = vdwg.mxu0
  %v777 = vadd.f32 %v177, %v774
  %v778 = vmul.f32 %v777, %v184
  %v779 = vtanh.pop %v778
  %v780 = vadd.f32 %v779, 1.0
  %v781 = vmul.f32 %v780, 0.5
  %v782 = vmul.f32 %v781, %v693
  %784 = vrot.lane.b32.xlu0 %v779, 64
  %v785 = vpop.permute.xlu0 %784
  %v787 = vmul.f32 %v781, %v785
  %789 = vrot.lane.b32.xlu0 %v787, 32
  %v790 = vpop.permute.xlu0 %789
  %v792 = vadd.f32 %v782, %v790
  %v793 = vtanh.pop %v792
  %795 = vrot.lane.b32.xlu0 %v793, 64
  %v796 = vpop.permute.xlu0 %795
  %v798 = vmul.f32 %v781, %v796
  %800 = vrot.lane.b32.xlu0 %v798, 32
  %v801 = vpop.permute.xlu0 %800
  %803 = vst.msk [vmem:[#allocation2 + $0x30] sm:$0xff] %vm204, %v801
  %v804 = vsel %vm204, %v801, 0
  %806 = vmatprep.subr.mxu0 0.0
  %807 = vmatpush1.msra.mxu0 %v19
  %808 = vmatprep.subr.mxu0 0.0
  %809 = vmatpush1.msra.mxu0 %v20
  %810 = vmatprep.subr.mxu0 0.0
  %811 = vmatpush1.msra.mxu0 %v21
  %812 = vmatprep.subr.mxu0 0.0
  %813 = vmatpush1.msra.mxu0 %v22
  %814 = vmatprep.subr.mxu0 0.0
  %815 = vmatpush1.msra.mxu0 0.0
  %816 = vmatprep.subr.mxu0 0.0
  %817 = vmatpush1.msra.mxu0 0.0
  %818 = vmatprep.subr.mxu0 0.0
  %819 = vmatpush1.msra.mxu0 0.0
  %820 = vmatprep.subr.mxu0 0.0
  %821 = vmatpush1.msra.mxu0 0.0
  %822 = vmatprep.subr.mxu0 0.0
  %823 = vmatpush1.msra.mxu0 0.0
  %824 = vmatprep.subr.mxu0 0.0
  %825 = vmatpush1.msra.mxu0 0.0
  %826 = vmatprep.subr.mxu0 0.0
  %827 = vmatpush1.msra.mxu0 0.0
  %828 = vmatprep.subr.mxu0 0.0
  %829 = vmatpush1.msra.mxu0 0.0
  %830 = vmatprep.subr.mxu0 0.0
  %831 = vmatpush1.msra.mxu0 0.0
  %832 = vmatprep.subr.mxu0 0.0
  %833 = vmatpush1.msra.mxu0 0.0
  %834 = vmatprep.subr.mxu0 0.0
  %835 = vmatpush1.msra.mxu0 0.0
  %836 = vmatprep.subr.mxu0 0.0
  %837 = vmatpush1.msra.mxu0 0.0
  %838 = vmatprep.subr.mxu0 0.0
  %839 = vmatpush1.msra.mxu0 0.0
  %840 = vmatprep.subr.mxu0 0.0
  %841 = vmatpush1.msra.mxu0 0.0
  %842 = vmatprep.subr.mxu0 0.0
  %843 = vmatpush1.msra.mxu0 0.0
  %844 = vmatprep.subr.mxu0 0.0
  %845 = vmatpush1.msra.mxu0 0.0
  %846 = vmatprep.subr.mxu0 0.0
  %847 = vmatpush1.msra.mxu0 0.0
  %848 = vmatprep.subr.mxu0 0.0
  %849 = vmatpush1.msra.mxu0 0.0
  %850 = vmatprep.subr.mxu0 0.0
  %851 = vmatpush1.msra.mxu0 0.0
  %852 = vmatprep.subr.mxu0 0.0
  %853 = vmatpush1.msra.mxu0 0.0
  %854 = vmatprep.subr.mxu0 0.0
  %855 = vmatpush1.msra.mxu0 0.0
  %856 = vmatprep.subr.mxu0 0.0
  %857 = vmatpush1.msra.mxu0 0.0
  %858 = vmatprep.subr.mxu0 0.0
  %859 = vmatpush1.msra.mxu0 0.0
  %860 = vmatprep.subr.mxu0 0.0
  %861 = vmatpush1.msra.mxu0 0.0
  %862 = vmatprep.subr.mxu0 0.0
  %863 = vmatpush1.msra.mxu0 0.0
  %864 = vmatprep.subr.mxu0 0.0
  %865 = vmatpush1.msra.mxu0 0.0
  %866 = vmatprep.subr.mxu0 0.0
  %867 = vmatpush1.msra.mxu0 0.0
  %868 = vmatprep.subr.mxu0 0.0
  %869 = vmatpush1.msra.mxu0 0.0
  %870 = vmatprep.mubr.f32.mxu0 0.0
  %871 = vmatmul.mubr.f32.gmra.mrb[0].mxu0 %v804
  %v872 = vpop.f32.mrb[0].mxu0
  %v873 = vadd.f32 0.0, %v872
  %v874 = vpop.f32.mrb[0].mxu0
  %875 = vdwg.mxu0
  %v876 = vadd.f32 %v178, %v873
  %v877 = vmul.f32 %v876, %v184
  %v878 = vtanh.pop %v877
  %v879 = vadd.f32 %v878, 1.0
  %v880 = vmul.f32 %v879, 0.5
  %v881 = vmul.f32 %v880, %v792
  %883 = vrot.lane.b32.xlu0 %v878, 64
  %v884 = vpop.permute.xlu0 %883
  %v886 = vmul.f32 %v880, %v884
  %888 = vrot.lane.b32.xlu0 %v886, 32
  %v889 = vpop.permute.xlu0 %888
  %v891 = vadd.f32 %v881, %v889
  %v892 = vtanh.pop %v891
  %894 = vrot.lane.b32.xlu0 %v892, 64
  %v895 = vpop.permute.xlu0 %894
  %v897 = vmul.f32 %v880, %v895
  %899 = vrot.lane.b32.xlu0 %v897, 32
  %v900 = vpop.permute.xlu0 %899
  %902 = vst.msk [vmem:[#allocation2 + $0x38] sm:$0xff] %vm204, %v900
  %903 = vst.msk [vmem:[%s5] sm:$0xff] %vm204, %v900
  %905 = vrot.lane.b32.xlu0 %v891, 96
  %v906 = vpop.permute.xlu0 %905
  %s908 = scalar_lea.vmem %s5, 8
  %909 = vst.msk [vmem:[%s908] sm:$0xff] %vm204, %v906
  %v910 = vld [vmem:[%s3] sm:$0xff]
  %v911 = vld [vmem:[%s3 + $0x8] sm:$0xff]
  %v912 = vld [vmem:[%s3 + $0x10] sm:$0xff]
  %v913 = vld [vmem:[%s3 + $0x18] sm:$0xff]
  %v914 = vld [vmem:[%s3 + $0x20] sm:$0x1]
  %v915 = vld [vmem:[%s3 + $0x21] sm:$0x1]
  %v916 = vld [vmem:[#allocation2] sm:$0xff]
  %v917 = vld [vmem:[#allocation2 + $0x8] sm:$0xff]
  %v918 = vld [vmem:[#allocation2 + $0x10] sm:$0xff]
  %v919 = vld [vmem:[#allocation2 + $0x18] sm:$0xff]
  %v920 = vld [vmem:[#allocation2 + $0x20] sm:$0xff]
  %v921 = vld [vmem:[#allocation2 + $0x28] sm:$0xff]
  %v922 = vld [vmem:[#allocation2 + $0x30] sm:$0xff]
  %v923 = vld [vmem:[#allocation2 + $0x38] sm:$0xff]
  %924 = vset.pattern.permute.xlu0 0
  %925 = vperm.xlu0 %924, %v25
  %v926 = vpop.permute.xlu0 %925
  %928 = vset.pattern.permute.xlu0 0
  %929 = vperm.xlu0 %928, %v26
  %v930 = vpop.permute.xlu0 %929
  %932 = vset.pattern.permute.xlu0 0
  %933 = vperm.xlu0 %932, %v27
  %v934 = vpop.permute.xlu0 %933
  %936 = vset.pattern.permute.xlu0 0
  %937 = vperm.xlu0 %936, %v28
  %v938 = vpop.permute.xlu0 %937
  %940 = vset.pattern.permute.xlu0 0
  %941 = vperm.xlu0 %940, %v29
  %v942 = vpop.permute.xlu0 %941
  %944 = vset.pattern.permute.xlu0 0
  %945 = vperm.xlu0 %944, %v30
  %v946 = vpop.permute.xlu0 %945
  %948 = vset.pattern.permute.xlu0 0
  %949 = vperm.xlu0 %948, %v31
  %v950 = vpop.permute.xlu0 %949
  %952 = vset.pattern.permute.xlu0 0
  %953 = vperm.xlu0 %952, %v32
  %v954 = vpop.permute.xlu0 %953
  %v956 = vlaneseq
  %v957 = vshrl.u32 %v956, 7
  %v958 = vsub.s32 0, %v957
  %v959 = vrot.slane %v914, %v958
  %v960 = vmul.f32 %v926, %v959
  %v961 = vmul.f32 %v930, %v959
  %v962 = vmul.f32 %v934, %v959
  %v963 = vmul.f32 %v938, %v959
  %v964 = vmul.f32 %v942, %v959
  %v965 = vmul.f32 %v946, %v959
  %v966 = vmul.f32 %v950, %v959
  %v967 = vmul.f32 %v954, %v959
  %v969 = vsel %vm204, %v916, 0
  %v972 = vsel %vm204, %v917, 0
  %v975 = vsel %vm204, %v918, 0
  %v978 = vsel %vm204, %v919, 0
  %v981 = vsel %vm204, %v920, 0
  %v984 = vsel %vm204, %v921, 0
  %v987 = vsel %vm204, %v922, 0
  %v990 = vsel %vm204, %v923, 0
  %992 = vmatprep.subr.mxu0 0.0
  %993 = vmatpush1.msra.mxu0 %v910
  %994 = vmatprep.subr.mxu0 0.0
  %995 = vmatpush1.msra.mxu0 %v911
  %996 = vmatprep.subr.mxu0 0.0
  %997 = vmatpush1.msra.mxu0 %v912
  %998 = vmatprep.subr.mxu0 0.0
  %999 = vmatpush1.msra.mxu0 %v913
  %1000 = vmatprep.subr.mxu0 0.0
  %1001 = vmatpush1.msra.mxu0 0.0
  %1002 = vmatprep.subr.mxu0 0.0
  %1003 = vmatpush1.msra.mxu0 0.0
  %1004 = vmatprep.subr.mxu0 0.0
  %1005 = vmatpush1.msra.mxu0 0.0
  %1006 = vmatprep.subr.mxu0 0.0
  %1007 = vmatpush1.msra.mxu0 0.0
  %1008 = vmatprep.subr.mxu0 0.0
  %1009 = vmatpush1.msra.mxu0 0.0
  %1010 = vmatprep.subr.mxu0 0.0
  %1011 = vmatpush1.msra.mxu0 0.0
  %1012 = vmatprep.subr.mxu0 0.0
  %1013 = vmatpush1.msra.mxu0 0.0
  %1014 = vmatprep.subr.mxu0 0.0
  %1015 = vmatpush1.msra.mxu0 0.0
  %1016 = vmatprep.subr.mxu0 0.0
  %1017 = vmatpush1.msra.mxu0 0.0
  %1018 = vmatprep.subr.mxu0 0.0
  %1019 = vmatpush1.msra.mxu0 0.0
  %1020 = vmatprep.subr.mxu0 0.0
  %1021 = vmatpush1.msra.mxu0 0.0
  %1022 = vmatprep.subr.mxu0 0.0
  %1023 = vmatpush1.msra.mxu0 0.0
  %1024 = vmatprep.subr.mxu0 0.0
  %1025 = vmatpush1.msra.mxu0 0.0
  %1026 = vmatprep.subr.mxu0 0.0
  %1027 = vmatpush1.msra.mxu0 0.0
  %1028 = vmatprep.subr.mxu0 0.0
  %1029 = vmatpush1.msra.mxu0 0.0
  %1030 = vmatprep.subr.mxu0 0.0
  %1031 = vmatpush1.msra.mxu0 0.0
  %1032 = vmatprep.subr.mxu0 0.0
  %1033 = vmatpush1.msra.mxu0 0.0
  %1034 = vmatprep.subr.mxu0 0.0
  %1035 = vmatpush1.msra.mxu0 0.0
  %1036 = vmatprep.subr.mxu0 0.0
  %1037 = vmatpush1.msra.mxu0 0.0
  %1038 = vmatprep.subr.mxu0 0.0
  %1039 = vmatpush1.msra.mxu0 0.0
  %1040 = vmatprep.subr.mxu0 0.0
  %1041 = vmatpush1.msra.mxu0 0.0
  %1042 = vmatprep.subr.mxu0 0.0
  %1043 = vmatpush1.msra.mxu0 0.0
  %1044 = vmatprep.subr.mxu0 0.0
  %1045 = vmatpush1.msra.mxu0 0.0
  %1046 = vmatprep.subr.mxu0 0.0
  %1047 = vmatpush1.msra.mxu0 0.0
  %1048 = vmatprep.subr.mxu0 0.0
  %1049 = vmatpush1.msra.mxu0 0.0
  %1050 = vmatprep.subr.mxu0 0.0
  %1051 = vmatpush1.msra.mxu0 0.0
  %1052 = vmatprep.subr.mxu0 0.0
  %1053 = vmatpush1.msra.mxu0 0.0
  %1054 = vmatprep.subr.mxu0 0.0
  %1055 = vmatpush1.msra.mxu0 0.0
  %1056 = vmatprep.mubr.f32.mxu0 0.0
  %1057 = vmatmul.mubr.f32.gmra.mrb[0].mxu0 %v969
  %v1058 = vpop.f32.mrb[0].mxu0
  %v1059 = vadd.f32 %v960, %v1058
  %v1060 = vpop.f32.mrb[0].mxu0
  %1061 = vmatprep.mubr.f32.mxu0 0.0
  %1062 = vmatmul.mubr.f32.gmra.mrb[0].mxu0 %v972
  %v1063 = vpop.f32.mrb[0].mxu0
  %v1064 = vadd.f32 %v961, %v1063
  %v1065 = vpop.f32.mrb[0].mxu0
  %1066 = vmatprep.mubr.f32.mxu0 0.0
  %1067 = vmatmul.mubr.f32.gmra.mrb[0].mxu0 %v975
  %v1068 = vpop.f32.mrb[0].mxu0
  %v1069 = vadd.f32 %v962, %v1068
  %v1070 = vpop.f32.mrb[0].mxu0
  %1071 = vmatprep.mubr.f32.mxu0 0.0
  %1072 = vmatmul.mubr.f32.gmra.mrb[0].mxu0 %v978
  %v1073 = vpop.f32.mrb[0].mxu0
  %v1074 = vadd.f32 %v963, %v1073
  %v1075 = vpop.f32.mrb[0].mxu0
  %1076 = vmatprep.mubr.f32.mxu0 0.0
  %1077 = vmatmul.mubr.f32.gmra.mrb[0].mxu0 %v981
  %v1078 = vpop.f32.mrb[0].mxu0
  %v1079 = vadd.f32 %v964, %v1078
  %v1080 = vpop.f32.mrb[0].mxu0
  %1081 = vmatprep.mubr.f32.mxu0 0.0
  %1082 = vmatmul.mubr.f32.gmra.mrb[0].mxu0 %v984
  %v1083 = vpop.f32.mrb[0].mxu0
  %v1084 = vadd.f32 %v965, %v1083
  %v1085 = vpop.f32.mrb[0].mxu0
  %1086 = vmatprep.mubr.f32.mxu0 0.0
  %1087 = vmatmul.mubr.f32.gmra.mrb[0].mxu0 %v987
  %v1088 = vpop.f32.mrb[0].mxu0
  %v1089 = vadd.f32 %v966, %v1088
  %v1090 = vpop.f32.mrb[0].mxu0
  %1091 = vmatprep.mubr.f32.mxu0 0.0
  %1092 = vmatmul.mubr.f32.gmra.mrb[0].mxu0 %v990
  %v1093 = vpop.f32.mrb[0].mxu0
  %v1094 = vadd.f32 %v967, %v1093
  %v1095 = vpop.f32.mrb[0].mxu0
  %1096 = vdwg.mxu0
  %v1097 = vlaneseq
  %v1098 = vshrl.u32 %v1097, 7
  %v1099 = vsub.s32 0, %v1098
  %v1100 = vrot.slane %v915, %v1099
  %v1101 = vadd.f32 %v1059, %v1100
  %v1102 = vadd.f32 %v1064, %v1100
  %v1103 = vadd.f32 %v1069, %v1100
  %v1104 = vadd.f32 %v1074, %v1100
  %v1105 = vadd.f32 %v1079, %v1100
  %v1106 = vadd.f32 %v1084, %v1100
  %v1107 = vadd.f32 %v1089, %v1100
  %v1108 = vadd.f32 %v1094, %v1100
  %vm1109 = vcmp.eq.s32.totalorder %v180, 1
  %v1110 = vmul.f32 %v1101, 1.442695
  %v1111 = vpow.pop %v1110
  %v1112 = vmul.f32 %v1102, 1.442695
  %v1113 = vpow.pop %v1112
  %v1114 = vmul.f32 %v1103, 1.442695
  %v1115 = vpow.pop %v1114
  %v1116 = vmul.f32 %v1104, 1.442695
  %v1117 = vpow.pop %v1116
  %v1118 = vmul.f32 %v1105, 1.442695
  %v1119 = vpow.pop %v1118
  %v1120 = vmul.f32 %v1106, 1.442695
  %v1121 = vpow.pop %v1120
  %v1122 = vmul.f32 %v1107, 1.442695
  %v1123 = vpow.pop %v1122
  %v1124 = vmul.f32 %v1108, 1.442695
  %v1125 = vpow.pop %v1124
  %v1126 = vsel %vm1109, %v1111, %v1101
  %v1127 = vsel %vm1109, %v1113, %v1102
  %v1128 = vsel %vm1109, %v1115, %v1103
  %v1129 = vsel %vm1109, %v1117, %v1104
  %v1130 = vsel %vm1109, %v1119, %v1105
  %v1131 = vsel %vm1109, %v1121, %v1106
  %v1132 = vsel %vm1109, %v1123, %v1107
  %v1133 = vsel %vm1109, %v1125, %v1108
  %1134 = vst.msk [vmem:[%s4] sm:$0xff] %vm33, %v1126
  %1135 = vst.msk [vmem:[%s4 + $0x8] sm:$0xff] %vm33, %v1127
  %1136 = vst.msk [vmem:[%s4 + $0x10] sm:$0xff] %vm33, %v1128
  %1137 = vst.msk [vmem:[%s4 + $0x18] sm:$0xff] %vm33, %v1129
  %1138 = vst.msk [vmem:[%s4 + $0x20] sm:$0xff] %vm33, %v1130
  %1139 = vst.msk [vmem:[%s4 + $0x28] sm:$0xff] %vm33, %v1131
  %1140 = vst.msk [vmem:[%s4 + $0x30] sm:$0xff] %vm33, %v1132
  %1141 = vst.msk [vmem:[%s4 + $0x38] sm:$0xff] %vm33, %v1133
  // Predicated region
  $region18: #{sequence_model_forward.1} parent=0 // pred_check
    _
  $region19: #{sequence_model_forward.1} parent=0 // pred_check_branch
    %1143 = sbr.rel (0) target = $region21
  $region20: #{sequence_model_forward.1} parent=0 // pred_region
    _
  $region21: #{sequence_model_forward.1} parent=0 // pred_fallthru
    _
  // Predicated region
  $region22: #{sequence_model_forward.1} parent=0 // pred_check
    _
  $region23: #{sequence_model_forward.1} parent=0 // pred_check_branch
    %1145 = sbr.rel (0) target = $region25
  $region24: #{sequence_model_forward.1} parent=0 // pred_region
    _
  $region25: #{sequence_model_forward.1} parent=0 // pred_fallthru
    _
  // Predicated region
  $region26: #{sequence_model_forward.1} parent=0 // pred_check
    _
  $region27: #{sequence_model_forward.1} parent=0 // pred_check_branch
    %1147 = sbr.rel (0) target = $region29
  $region28: #{sequence_model_forward.1} parent=0 // pred_region
    _
  $region29: #{sequence_model_forward.1} parent=0 // pred_fallthru
    _
  // Predicated region
  $region30: #{sequence_model_forward.1} parent=0 // pred_check
    _
  $region31: #{sequence_model_forward.1} parent=0 // pred_check_branch
    %1149 = sbr.rel (0) target = $region33
  $region32: #{sequence_model_forward.1} parent=0 // pred_region
    _
  $region33: #{sequence_model_forward.1} parent=0 // pred_fallthru
    _

</llo_original>
